<compile_context>
chip_gen: v7x
topology: tpu7x:2x2x1
jax: 0.10.0
libtpu: 0.0.40
codegen_flags: <defaults>
</compile_context>

<pallas_src>
import functools
import math

import jax
import jax.numpy as jnp
from jax.experimental import pallas as pl
from jax.experimental.pallas import tpu as pltpu


def _round_up(x, m):
    return (x + m - 1) // m * m


def _single_conv_kernel(x0_ref, x1_ref, w_ref, affine_ref, mask_ref, o_ref,
                        xwin_ref, kstack_ref, stats_ref, *,
                        offsets, tile, cin, inv_count, eps):
    # x0_ref/x1_ref: (Cin, TILE) bf16   input tiles t and min(t+1, last)
    # w_ref:         (Cout, k^3*Cin) bf16  K-folded conv weights
    # affine_ref:    (2, Cout, 1) f32   [gamma; beta]
    # mask_ref:      (1, TILE) f32      1.0 at valid output base positions
    # o_ref:         (Cout, TILE) f32   channel-major, lane-dense output tile
    # xwin_ref:      (Cin, 2*TILE) bf16 scratch: halo'd input window
    # kstack_ref:    (k^3*Cin, TILE) bf16 scratch: MXU contraction operand
    # stats_ref:     (2, Cout, 1) f32   scratch: [sum; sumsq] -> [scale; shift]
    ph = pl.program_id(1)
    t = pl.program_id(2)
    n_tiles = pl.num_programs(2)

    # Halo'd window covering base positions [t*TILE, (t+2)*TILE).
    xwin_ref[:, :tile] = x0_ref[...]
    xwin_ref[:, tile:] = x1_ref[...]

    # K-stack: row (j*Cin + ci) at column q holds x[ci, t*TILE + q + off_j].
    # Offsets are static -> static slices; each tap touches only TILE columns.
    for j, off in enumerate(offsets):
        kstack_ref[j * cin:(j + 1) * cin, :] = xwin_ref[:, off:off + tile]

    # All k^3 taps folded into one MXU contraction (K = k^3*Cin), f32 accumulate.
    acc = jnp.dot(w_ref[...], kstack_ref[...],
                  preferred_element_type=jnp.float32)            # (Cout, TILE)

    @pl.when(ph == 0)
    def _stats_pass():
        @pl.when(t == 0)
        def _():
            stats_ref[...] = jnp.zeros_like(stats_ref)

        m = mask_ref[...]                                         # (1, TILE)
        am = acc * m
        stats_ref[0] += jnp.sum(am, axis=1, keepdims=True)        # sum
        stats_ref[1] += jnp.sum(am * acc, axis=1, keepdims=True)  # sum of sq

        @pl.when(t == n_tiles - 1)
        def _():
            # Fold InstanceNorm + affine into one per-channel scale/shift.
            mean = stats_ref[0] * inv_count
            var = jnp.maximum(stats_ref[1] * inv_count - mean * mean, 0.0)
            scale = affine_ref[0] * jax.lax.rsqrt(var + eps)
            stats_ref[0] = scale
            stats_ref[1] = affine_ref[1] - mean * scale

    @pl.when(ph == 1)
    def _normalize_pass():
        o_ref[...] = jnp.maximum(
            acc * stats_ref[0] + stats_ref[1], 0.0).astype(o_ref.dtype)


def single_conv_forward(x, weight, bias, gamma, beta, *, stride, padding,
                        eps=1e-5):
    """Fused Conv3d(+bias) -> InstanceNorm3d(affine=True) -> ReLU.

    x:      (N, Cin, D, H, W) f32
    weight: (Cout, Cin, k, k, k)
    bias:   (Cout,) -- accepted for API parity; a per-channel constant added
            before InstanceNorm is cancelled exactly by the mean subtraction,
            so it is not applied (only valid because the norm is fused here).
    gamma, beta: (Cout,) InstanceNorm affine parameters.
    """
    del bias  # mathematically a no-op in front of InstanceNorm

    N, Cin, D, H, W = x.shape
    Cout, _, k, _, _ = weight.shape
    s, p = stride, padding
    Do = (D + 2 * p - k) // s + 1
    Ho = (H + 2 * p - k) // s + 1
    Wo = (W + 2 * p - k) // s + 1
    Dp, Hp, Wp = D + 2 * p, H + 2 * p, W + 2 * p
    Sp = Dp * Hp * Wp                       # flat padded-grid spatial size
    n_valid = Do * Ho * Wo                  # real output positions per (n, c)
    KC = k * k * k * Cin                    # folded MXU contraction depth

    # Flat tap offsets on the padded grid (row-major d, h, w).
    offsets = tuple(kd * Hp * Wp + kh * Wp + kw
                    for kd in range(k) for kh in range(k) for kw in range(k))
    max_off = offsets[-1]

    # Spatial tile: must cover the tap halo (TILE >= max_off) so tile t only
    # ever needs input blocks t and t+1; prefer >=512 lanes to amortize the
    # ~0.35us per-grid-step overhead, capped so the K-stack scratch stays in a
    # v7x-friendly VMEM budget.
    tile_lo = max(_round_up(max_off, 128), 128)
    tile_hi = max(tile_lo, ((12 << 20) // (2 * KC)) // 128 * 128)
    tile = min(max(tile_lo, 512), tile_hi)
    assert tile % 128 == 0 and tile >= max_off, (tile, max_off)

    n_tiles = -(-Sp // tile)
    XL = n_tiles * tile
    # Halo safety: every VALID output base b satisfies b + max_off <= Sp - 1 < XL,
    # so valid taps never read past the real data even at the clamped last tile;
    # wrapped/garbage columns are masked out of the stats and cropped on host.
    assert Sp <= XL

    # --- host-side layout prep (cast to bf16 BEFORE padding; no im2col) ---
    xb = x.astype(jnp.bfloat16)
    xp = jnp.pad(xb, ((0, 0), (0, 0), (p, p), (p, p), (p, p)))
    x_ext = jnp.pad(xp.reshape(N, Cin, Sp), ((0, 0), (0, 0), (0, XL - Sp)))

    # (Cout, Cin, k, k, k) -> (Cout, k^3*Cin), column index = tap*Cin + ci.
    w2 = weight.transpose(0, 2, 3, 4, 1).reshape(Cout, KC).astype(jnp.bfloat16)
    affine = jnp.stack([gamma, beta]).reshape(2, Cout, 1).astype(jnp.float32)

    # Valid output base positions on the flat padded grid (handles stride).
    valid = jnp.zeros((Dp, Hp, Wp), jnp.float32)
    valid = valid.at[:(Do - 1) * s + 1:s,
                     :(Ho - 1) * s + 1:s,
                     :(Wo - 1) * s + 1:s].set(1.0)
    mask = jnp.zeros((1, XL), jnp.float32).at[0, :Sp].set(valid.reshape(-1))

    kernel = functools.partial(
        _single_conv_kernel, offsets=offsets, tile=tile, cin=Cin,
        inv_count=1.0 / float(n_valid), eps=float(eps))

    last = n_tiles - 1
    # VMEM estimate: double-buffered blocks + resident weights + scratch + acc.
    vmem_est = (2 * (2 * Cin * tile * 2 + tile * 4 + Cout * tile * 4)
                + Cout * KC * 2 + 2 * Cout * 4
                + Cin * 2 * tile * 2 + KC * tile * 2 + 2 * Cout * 4
                + Cout * tile * 4)
    vmem_limit = int(min(max(2 * vmem_est, 16 << 20), 48 << 20))

    out = pl.pallas_call(
        kernel,
        out_shape=jax.ShapeDtypeStruct((N, Cout, XL), jnp.float32),
        grid_spec=pltpu.PrefetchScalarGridSpec(
            num_scalar_prefetch=0,
            # (sample, phase, spatial tile); phase 0 = stats, phase 1 = store.
            grid=(N, 2, n_tiles),
            in_specs=[
                pl.BlockSpec((None, Cin, tile), lambda n, ph, t: (n, 0, t)),
                pl.BlockSpec((None, Cin, tile),
                             lambda n, ph, t: (n, 0, jnp.minimum(t + 1, last))),
                pl.BlockSpec((Cout, KC), lambda n, ph, t: (0, 0)),
                pl.BlockSpec((2, Cout, 1), lambda n, ph, t: (0, 0, 0)),
                pl.BlockSpec((1, tile), lambda n, ph, t: (0, t)),
            ],
            # Phase 0 pins the output block to tile 0 (never written there), so
            # each output tile is DMA'd to HBM exactly once, after phase 1.
            out_specs=pl.BlockSpec((None, Cout, tile),
                                   lambda n, ph, t: (n, 0, t * ph)),
            scratch_shapes=[
                pltpu.VMEM((Cin, 2 * tile), jnp.bfloat16),   # halo'd window
                pltpu.VMEM((KC, tile), jnp.bfloat16),        # MXU K-stack
                pltpu.VMEM((2, Cout, 1), jnp.float32),       # sum/sumsq->scale/shift
            ],
        ),
        compiler_params=pltpu.CompilerParams(
            dimension_semantics=("parallel", "arbitrary", "arbitrary"),
            vmem_limit_bytes=vmem_limit),
    )(x_ext, x_ext, w2, affine, mask)

    # Pure crop/reshape epilogue (kernel output already channel-major and
    # lane-dense); stride handled by the final strided slice.
    y = out[:, :, :Sp].reshape(N, Cout, Dp, Hp, Wp)
    return y[:, :, :(Do - 1) * s + 1:s,
             :(Ho - 1) * s + 1:s,
             :(Wo - 1) * s + 1:s]


def _reference(x, weight, bias, gamma, beta, *, stride, padding):
    y = jax.lax.conv_general_dilated(
        x, weight,
        window_strides=(stride,) * 3,
        padding=[(padding, padding)] * 3,
        dimension_numbers=("NCDHW", "OIDHW", "NCDHW"),
        precision=jax.lax.Precision.HIGHEST,
    )
    y = y + bias.reshape(1, -1, 1, 1, 1)
    mean = y.mean(axis=(2, 3, 4), keepdims=True)
    var = ((y - mean) ** 2).mean(axis=(2, 3, 4), keepdims=True)
    yn = (y - mean) / jnp.sqrt(var + 1e-5)
    out = yn * gamma.reshape(1, -1, 1, 1, 1) + beta.reshape(1, -1, 1, 1, 1)
    return jnp.maximum(out, 0.0)


if __name__ == "__main__":
    N, Cin, Cout = 2, 4, 8
    D = H = W = 8
    kernel_size, stride, padding = 3, 1, 1

    key = jax.random.PRNGKey(0)
    kx, kw_, kb = jax.random.split(key, 3)

    x = jax.random.normal(kx, (N, Cin, D, H, W), dtype=jnp.float32)

    # Deterministic Conv3d-style init (uniform in [-bound, bound]).
    fan_in = Cin * kernel_size ** 3
    bound = 1.0 / math.sqrt(fan_in)
    weight = jax.random.uniform(
        kw_, (Cout, Cin, kernel_size, kernel_size, kernel_size),
        minval=-bound, maxval=bound, dtype=jnp.float32)
    bias = jax.random.uniform(kb, (Cout,), minval=-bound, maxval=bound,
                              dtype=jnp.float32)
    # InstanceNorm3d(affine=True) default init: gamma=1, beta=0.
    gamma = jnp.ones((Cout,), dtype=jnp.float32)
    beta = jnp.zeros((Cout,), dtype=jnp.float32)

    run = jax.jit(functools.partial(single_conv_forward,
                                    stride=stride, padding=padding))
    out = jax.block_until_ready(run(x, weight, bias, gamma, beta))

    ref = _reference(x, weight, bias, gamma, beta,
                     stride=stride, padding=padding)
    assert out.shape == ref.shape, (out.shape, ref.shape)
    # bf16 MXU operands (f32 accumulation) give ~1e-3..1e-2 abs error on the
    # unit-variance normalized output vs. the full-f32 reference.
    max_err = float(jnp.max(jnp.abs(out - ref)))
    assert jnp.allclose(out, ref, atol=2e-2, rtol=2e-2), max_err

    print("KERNEL_OK")
</pallas_src>

<mosaic_0001>
module attributes {stable_mosaic.version = 11 : i64} {
  func.func @_single_conv_kernel(%arg0: i32, %arg1: i32, %arg2: i32, %arg3: memref<1x4x512xbf16, #tpu.memory_space<vmem>>, %arg4: memref<1x4x512xbf16, #tpu.memory_space<vmem>>, %arg5: memref<8x108xbf16, #tpu.memory_space<vmem>>, %arg6: memref<2x8x1xf32, #tpu.memory_space<vmem>>, %arg7: memref<1x512xf32, #tpu.memory_space<vmem>>, %arg8: memref<1x8x512xf32, #tpu.memory_space<vmem>>, %arg9: memref<4x1024xbf16, #tpu.memory_space<vmem>>, %arg10: memref<108x512xbf16, #tpu.memory_space<vmem>>, %arg11: memref<2x8x1xf32, #tpu.memory_space<vmem>>) attributes {dimension_semantics = [#tpu.dimension_semantics<parallel>, #tpu.dimension_semantics<arbitrary>, #tpu.dimension_semantics<arbitrary>], iteration_bounds = array<i64: 2, 2, 2>, scalar_prefetch = 0 : i64, scratch_operands = 3 : i64, tpu.core_type = #tpu.core_type<tc>, window_params = [{transform_indices = @transform_0, window_bounds = array<i64: 1, 4, 512>}, {transform_indices = @transform_1, window_bounds = array<i64: 1, 4, 512>}, {pipeline_mode = #tpu.pipeline_mode<synchronous>, transform_indices = @transform_2, window_bounds = array<i64: 8, 108>}, {pipeline_mode = #tpu.pipeline_mode<synchronous>, transform_indices = @transform_3, window_bounds = array<i64: 2, 8, 1>}, {transform_indices = @transform_4, window_bounds = array<i64: 1, 512>}, {transform_indices = @transform_5, window_bounds = array<i64: 1, 8, 512>}]} {
    %c0 = arith.constant 0 : index
    %c0_0 = arith.constant 0 : index
    %c0_1 = arith.constant 0 : index
    %0 = vector.load %arg3[%c0, %c0_0, %c0_1] : memref<1x4x512xbf16, #tpu.memory_space<vmem>>, vector<1x4x512xbf16>
    %1 = vector.shape_cast %0 : vector<1x4x512xbf16> to vector<4x512xbf16>
    %c0_2 = arith.constant 0 : index
    %c0_3 = arith.constant 0 : index
    %2 = vector.load %arg9[%c0_2, %c0_3] : memref<4x1024xbf16, #tpu.memory_space<vmem>>, vector<4x512xbf16>
    tpu.vector_store %arg9[%c0_2, %c0_3], %1 {strides = array<i32>} : memref<4x1024xbf16, #tpu.memory_space<vmem>>, vector<4x512xbf16>,
    %c0_4 = arith.constant 0 : index
    %c0_5 = arith.constant 0 : index
    %c0_6 = arith.constant 0 : index
    %3 = vector.load %arg4[%c0_4, %c0_5, %c0_6] : memref<1x4x512xbf16, #tpu.memory_space<vmem>>, vector<1x4x512xbf16>
    %4 = vector.shape_cast %3 : vector<1x4x512xbf16> to vector<4x512xbf16>
    %c0_7 = arith.constant 0 : index
    %c512 = arith.constant 512 : index
    %5 = vector.load %arg9[%c0_7, %c512] : memref<4x1024xbf16, #tpu.memory_space<vmem>>, vector<4x512xbf16>
    tpu.vector_store %arg9[%c0_7, %c512], %4 {strides = array<i32>} : memref<4x1024xbf16, #tpu.memory_space<vmem>>, vector<4x512xbf16>,
    %c0_8 = arith.constant 0 : index
    %c0_9 = arith.constant 0 : index
    %6 = vector.load %arg9[%c0_8, %c0_9] : memref<4x1024xbf16, #tpu.memory_space<vmem>>, vector<4x512xbf16>
    %c0_10 = arith.constant 0 : index
    %c0_11 = arith.constant 0 : index
    %7 = vector.load %arg10[%c0_10, %c0_11] : memref<108x512xbf16, #tpu.memory_space<vmem>>, vector<4x512xbf16>
    tpu.vector_store %arg10[%c0_10, %c0_11], %6 {strides = array<i32>} : memref<108x512xbf16, #tpu.memory_space<vmem>>, vector<4x512xbf16>,
    %c0_12 = arith.constant 0 : index
    %c1 = arith.constant 1 : index
    %8 = vector.load %arg9[%c0_12, %c1] : memref<4x1024xbf16, #tpu.memory_space<vmem>>, vector<4x512xbf16>
    %c4 = arith.constant 4 : index
    %c0_13 = arith.constant 0 : index
    %9 = vector.load %arg10[%c4, %c0_13] : memref<108x512xbf16, #tpu.memory_space<vmem>>, vector<4x512xbf16>
    tpu.vector_store %arg10[%c4, %c0_13], %8 {strides = array<i32>} : memref<108x512xbf16, #tpu.memory_space<vmem>>, vector<4x512xbf16>,
    %c0_14 = arith.constant 0 : index
    %c2 = arith.constant 2 : index
    %10 = vector.load %arg9[%c0_14, %c2] : memref<4x1024xbf16, #tpu.memory_space<vmem>>, vector<4x512xbf16>
    %c8 = arith.constant 8 : index
    %c0_15 = arith.constant 0 : index
    %11 = vector.load %arg10[%c8, %c0_15] : memref<108x512xbf16, #tpu.memory_space<vmem>>, vector<4x512xbf16>
    tpu.vector_store %arg10[%c8, %c0_15], %10 {strides = array<i32>} : memref<108x512xbf16, #tpu.memory_space<vmem>>, vector<4x512xbf16>,
    %c0_16 = arith.constant 0 : index
    %c10 = arith.constant 10 : index
    %12 = vector.load %arg9[%c0_16, %c10] : memref<4x1024xbf16, #tpu.memory_space<vmem>>, vector<4x512xbf16>
    %c12 = arith.constant 12 : index
    %c0_17 = arith.constant 0 : index
    %13 = vector.load %arg10[%c12, %c0_17] : memref<108x512xbf16, #tpu.memory_space<vmem>>, vector<4x512xbf16>
    tpu.vector_store %arg10[%c12, %c0_17], %12 {strides = array<i32>} : memref<108x512xbf16, #tpu.memory_space<vmem>>, vector<4x512xbf16>,
    %c0_18 = arith.constant 0 : index
    %c11 = arith.constant 11 : index
    %14 = vector.load %arg9[%c0_18, %c11] : memref<4x1024xbf16, #tpu.memory_space<vmem>>, vector<4x512xbf16>
    %c16 = arith.constant 16 : index
    %c0_19 = arith.constant 0 : index
    %15 = vector.load %arg10[%c16, %c0_19] : memref<108x512xbf16, #tpu.memory_space<vmem>>, vector<4x512xbf16>
    tpu.vector_store %arg10[%c16, %c0_19], %14 {strides = array<i32>} : memref<108x512xbf16, #tpu.memory_space<vmem>>, vector<4x512xbf16>,
    %c0_20 = arith.constant 0 : index
    %c12_21 = arith.constant 12 : index
    %16 = vector.load %arg9[%c0_20, %c12_21] : memref<4x1024xbf16, #tpu.memory_space<vmem>>, vector<4x512xbf16>
    %c20 = arith.constant 20 : index
    %c0_22 = arith.constant 0 : index
    %17 = vector.load %arg10[%c20, %c0_22] : memref<108x512xbf16, #tpu.memory_space<vmem>>, vector<4x512xbf16>
    tpu.vector_store %arg10[%c20, %c0_22], %16 {strides = array<i32>} : memref<108x512xbf16, #tpu.memory_space<vmem>>, vector<4x512xbf16>,
    %c0_23 = arith.constant 0 : index
    %c20_24 = arith.constant 20 : index
    %18 = vector.load %arg9[%c0_23, %c20_24] : memref<4x1024xbf16, #tpu.memory_space<vmem>>, vector<4x512xbf16>
    %c24 = arith.constant 24 : index
    %c0_25 = arith.constant 0 : index
    %19 = vector.load %arg10[%c24, %c0_25] : memref<108x512xbf16, #tpu.memory_space<vmem>>, vector<4x512xbf16>
    tpu.vector_store %arg10[%c24, %c0_25], %18 {strides = array<i32>} : memref<108x512xbf16, #tpu.memory_space<vmem>>, vector<4x512xbf16>,
    %c0_26 = arith.constant 0 : index
    %c21 = arith.constant 21 : index
    %20 = vector.load %arg9[%c0_26, %c21] : memref<4x1024xbf16, #tpu.memory_space<vmem>>, vector<4x512xbf16>
    %c28 = arith.constant 28 : index
    %c0_27 = arith.constant 0 : index
    %21 = vector.load %arg10[%c28, %c0_27] : memref<108x512xbf16, #tpu.memory_space<vmem>>, vector<4x512xbf16>
    tpu.vector_store %arg10[%c28, %c0_27], %20 {strides = array<i32>} : memref<108x512xbf16, #tpu.memory_space<vmem>>, vector<4x512xbf16>,
    %c0_28 = arith.constant 0 : index
    %c22 = arith.constant 22 : index
    %22 = vector.load %arg9[%c0_28, %c22] : memref<4x1024xbf16, #tpu.memory_space<vmem>>, vector<4x512xbf16>
    %c32 = arith.constant 32 : index
    %c0_29 = arith.constant 0 : index
    %23 = vector.load %arg10[%c32, %c0_29] : memref<108x512xbf16, #tpu.memory_space<vmem>>, vector<4x512xbf16>
    tpu.vector_store %arg10[%c32, %c0_29], %22 {strides = array<i32>} : memref<108x512xbf16, #tpu.memory_space<vmem>>, vector<4x512xbf16>,
    %c0_30 = arith.constant 0 : index
    %c100 = arith.constant 100 : index
    %24 = vector.load %arg9[%c0_30, %c100] : memref<4x1024xbf16, #tpu.memory_space<vmem>>, vector<4x512xbf16>
    %c36 = arith.constant 36 : index
    %c0_31 = arith.constant 0 : index
    %25 = vector.load %arg10[%c36, %c0_31] : memref<108x512xbf16, #tpu.memory_space<vmem>>, vector<4x512xbf16>
    tpu.vector_store %arg10[%c36, %c0_31], %24 {strides = array<i32>} : memref<108x512xbf16, #tpu.memory_space<vmem>>, vector<4x512xbf16>,
    %c0_32 = arith.constant 0 : index
    %c101 = arith.constant 101 : index
    %26 = vector.load %arg9[%c0_32, %c101] : memref<4x1024xbf16, #tpu.memory_space<vmem>>, vector<4x512xbf16>
    %c40 = arith.constant 40 : index
    %c0_33 = arith.constant 0 : index
    %27 = vector.load %arg10[%c40, %c0_33] : memref<108x512xbf16, #tpu.memory_space<vmem>>, vector<4x512xbf16>
    tpu.vector_store %arg10[%c40, %c0_33], %26 {strides = array<i32>} : memref<108x512xbf16, #tpu.memory_space<vmem>>, vector<4x512xbf16>,
    %c0_34 = arith.constant 0 : index
    %c102 = arith.constant 102 : index
    %28 = vector.load %arg9[%c0_34, %c102] : memref<4x1024xbf16, #tpu.memory_space<vmem>>, vector<4x512xbf16>
    %c44 = arith.constant 44 : index
    %c0_35 = arith.constant 0 : index
    %29 = vector.load %arg10[%c44, %c0_35] : memref<108x512xbf16, #tpu.memory_space<vmem>>, vector<4x512xbf16>
    tpu.vector_store %arg10[%c44, %c0_35], %28 {strides = array<i32>} : memref<108x512xbf16, #tpu.memory_space<vmem>>, vector<4x512xbf16>,
    %c0_36 = arith.constant 0 : index
    %c110 = arith.constant 110 : index
    %30 = vector.load %arg9[%c0_36, %c110] : memref<4x1024xbf16, #tpu.memory_space<vmem>>, vector<4x512xbf16>
    %c48 = arith.constant 48 : index
    %c0_37 = arith.constant 0 : index
    %31 = vector.load %arg10[%c48, %c0_37] : memref<108x512xbf16, #tpu.memory_space<vmem>>, vector<4x512xbf16>
    tpu.vector_store %arg10[%c48, %c0_37], %30 {strides = array<i32>} : memref<108x512xbf16, #tpu.memory_space<vmem>>, vector<4x512xbf16>,
    %c0_38 = arith.constant 0 : index
    %c111 = arith.constant 111 : index
    %32 = vector.load %arg9[%c0_38, %c111] : memref<4x1024xbf16, #tpu.memory_space<vmem>>, vector<4x512xbf16>
    %c52 = arith.constant 52 : index
    %c0_39 = arith.constant 0 : index
    %33 = vector.load %arg10[%c52, %c0_39] : memref<108x512xbf16, #tpu.memory_space<vmem>>, vector<4x512xbf16>
    tpu.vector_store %arg10[%c52, %c0_39], %32 {strides = array<i32>} : memref<108x512xbf16, #tpu.memory_space<vmem>>, vector<4x512xbf16>,
    %c0_40 = arith.constant 0 : index
    %c112 = arith.constant 112 : index
    %34 = vector.load %arg9[%c0_40, %c112] : memref<4x1024xbf16, #tpu.memory_space<vmem>>, vector<4x512xbf16>
    %c56 = arith.constant 56 : index
    %c0_41 = arith.constant 0 : index
    %35 = vector.load %arg10[%c56, %c0_41] : memref<108x512xbf16, #tpu.memory_space<vmem>>, vector<4x512xbf16>
    tpu.vector_store %arg10[%c56, %c0_41], %34 {strides = array<i32>} : memref<108x512xbf16, #tpu.memory_space<vmem>>, vector<4x512xbf16>,
    %c0_42 = arith.constant 0 : index
    %c120 = arith.constant 120 : index
    %36 = vector.load %arg9[%c0_42, %c120] : memref<4x1024xbf16, #tpu.memory_space<vmem>>, vector<4x512xbf16>
    %c60 = arith.constant 60 : index
    %c0_43 = arith.constant 0 : index
    %37 = vector.load %arg10[%c60, %c0_43] : memref<108x512xbf16, #tpu.memory_space<vmem>>, vector<4x512xbf16>
    tpu.vector_store %arg10[%c60, %c0_43], %36 {strides = array<i32>} : memref<108x512xbf16, #tpu.memory_space<vmem>>, vector<4x512xbf16>,
    %c0_44 = arith.constant 0 : index
    %c121 = arith.constant 121 : index
    %38 = vector.load %arg9[%c0_44, %c121] : memref<4x1024xbf16, #tpu.memory_space<vmem>>, vector<4x512xbf16>
    %c64 = arith.constant 64 : index
    %c0_45 = arith.constant 0 : index
    %39 = vector.load %arg10[%c64, %c0_45] : memref<108x512xbf16, #tpu.memory_space<vmem>>, vector<4x512xbf16>
    tpu.vector_store %arg10[%c64, %c0_45], %38 {strides = array<i32>} : memref<108x512xbf16, #tpu.memory_space<vmem>>, vector<4x512xbf16>,
    %c0_46 = arith.constant 0 : index
    %c122 = arith.constant 122 : index
    %40 = vector.load %arg9[%c0_46, %c122] : memref<4x1024xbf16, #tpu.memory_space<vmem>>, vector<4x512xbf16>
    %c68 = arith.constant 68 : index
    %c0_47 = arith.constant 0 : index
    %41 = vector.load %arg10[%c68, %c0_47] : memref<108x512xbf16, #tpu.memory_space<vmem>>, vector<4x512xbf16>
    tpu.vector_store %arg10[%c68, %c0_47], %40 {strides = array<i32>} : memref<108x512xbf16, #tpu.memory_space<vmem>>, vector<4x512xbf16>,
    %c0_48 = arith.constant 0 : index
    %c200 = arith.constant 200 : index
    %42 = vector.load %arg9[%c0_48, %c200] : memref<4x1024xbf16, #tpu.memory_space<vmem>>, vector<4x512xbf16>
    %c72 = arith.constant 72 : index
    %c0_49 = arith.constant 0 : index
    %43 = vector.load %arg10[%c72, %c0_49] : memref<108x512xbf16, #tpu.memory_space<vmem>>, vector<4x512xbf16>
    tpu.vector_store %arg10[%c72, %c0_49], %42 {strides = array<i32>} : memref<108x512xbf16, #tpu.memory_space<vmem>>, vector<4x512xbf16>,
    %c0_50 = arith.constant 0 : index
    %c201 = arith.constant 201 : index
    %44 = vector.load %arg9[%c0_50, %c201] : memref<4x1024xbf16, #tpu.memory_space<vmem>>, vector<4x512xbf16>
    %c76 = arith.constant 76 : index
    %c0_51 = arith.constant 0 : index
    %45 = vector.load %arg10[%c76, %c0_51] : memref<108x512xbf16, #tpu.memory_space<vmem>>, vector<4x512xbf16>
    tpu.vector_store %arg10[%c76, %c0_51], %44 {strides = array<i32>} : memref<108x512xbf16, #tpu.memory_space<vmem>>, vector<4x512xbf16>,
    %c0_52 = arith.constant 0 : index
    %c202 = arith.constant 202 : index
    %46 = vector.load %arg9[%c0_52, %c202] : memref<4x1024xbf16, #tpu.memory_space<vmem>>, vector<4x512xbf16>
    %c80 = arith.constant 80 : index
    %c0_53 = arith.constant 0 : index
    %47 = vector.load %arg10[%c80, %c0_53] : memref<108x512xbf16, #tpu.memory_space<vmem>>, vector<4x512xbf16>
    tpu.vector_store %arg10[%c80, %c0_53], %46 {strides = array<i32>} : memref<108x512xbf16, #tpu.memory_space<vmem>>, vector<4x512xbf16>,
    %c0_54 = arith.constant 0 : index
    %c210 = arith.constant 210 : index
    %48 = vector.load %arg9[%c0_54, %c210] : memref<4x1024xbf16, #tpu.memory_space<vmem>>, vector<4x512xbf16>
    %c84 = arith.constant 84 : index
    %c0_55 = arith.constant 0 : index
    %49 = vector.load %arg10[%c84, %c0_55] : memref<108x512xbf16, #tpu.memory_space<vmem>>, vector<4x512xbf16>
    tpu.vector_store %arg10[%c84, %c0_55], %48 {strides = array<i32>} : memref<108x512xbf16, #tpu.memory_space<vmem>>, vector<4x512xbf16>,
    %c0_56 = arith.constant 0 : index
    %c211 = arith.constant 211 : index
    %50 = vector.load %arg9[%c0_56, %c211] : memref<4x1024xbf16, #tpu.memory_space<vmem>>, vector<4x512xbf16>
    %c88 = arith.constant 88 : index
    %c0_57 = arith.constant 0 : index
    %51 = vector.load %arg10[%c88, %c0_57] : memref<108x512xbf16, #tpu.memory_space<vmem>>, vector<4x512xbf16>
    tpu.vector_store %arg10[%c88, %c0_57], %50 {strides = array<i32>} : memref<108x512xbf16, #tpu.memory_space<vmem>>, vector<4x512xbf16>,
    %c0_58 = arith.constant 0 : index
    %c212 = arith.constant 212 : index
    %52 = vector.load %arg9[%c0_58, %c212] : memref<4x1024xbf16, #tpu.memory_space<vmem>>, vector<4x512xbf16>
    %c92 = arith.constant 92 : index
    %c0_59 = arith.constant 0 : index
    %53 = vector.load %arg10[%c92, %c0_59] : memref<108x512xbf16, #tpu.memory_space<vmem>>, vector<4x512xbf16>
    tpu.vector_store %arg10[%c92, %c0_59], %52 {strides = array<i32>} : memref<108x512xbf16, #tpu.memory_space<vmem>>, vector<4x512xbf16>,
    %c0_60 = arith.constant 0 : index
    %c220 = arith.constant 220 : index
    %54 = vector.load %arg9[%c0_60, %c220] : memref<4x1024xbf16, #tpu.memory_space<vmem>>, vector<4x512xbf16>
    %c96 = arith.constant 96 : index
    %c0_61 = arith.constant 0 : index
    %55 = vector.load %arg10[%c96, %c0_61] : memref<108x512xbf16, #tpu.memory_space<vmem>>, vector<4x512xbf16>
    tpu.vector_store %arg10[%c96, %c0_61], %54 {strides = array<i32>} : memref<108x512xbf16, #tpu.memory_space<vmem>>, vector<4x512xbf16>,
    %c0_62 = arith.constant 0 : index
    %c221 = arith.constant 221 : index
    %56 = vector.load %arg9[%c0_62, %c221] : memref<4x1024xbf16, #tpu.memory_space<vmem>>, vector<4x512xbf16>
    %c100_63 = arith.constant 100 : index
    %c0_64 = arith.constant 0 : index
    %57 = vector.load %arg10[%c100_63, %c0_64] : memref<108x512xbf16, #tpu.memory_space<vmem>>, vector<4x512xbf16>
    tpu.vector_store %arg10[%c100_63, %c0_64], %56 {strides = array<i32>} : memref<108x512xbf16, #tpu.memory_space<vmem>>, vector<4x512xbf16>,
    %c0_65 = arith.constant 0 : index
    %c222 = arith.constant 222 : index
    %58 = vector.load %arg9[%c0_65, %c222] : memref<4x1024xbf16, #tpu.memory_space<vmem>>, vector<4x512xbf16>
    %c104 = arith.constant 104 : index
    %c0_66 = arith.constant 0 : index
    %59 = vector.load %arg10[%c104, %c0_66] : memref<108x512xbf16, #tpu.memory_space<vmem>>, vector<4x512xbf16>
    tpu.vector_store %arg10[%c104, %c0_66], %58 {strides = array<i32>} : memref<108x512xbf16, #tpu.memory_space<vmem>>, vector<4x512xbf16>,
    %c0_67 = arith.constant 0 : index
    %c0_68 = arith.constant 0 : index
    %60 = vector.load %arg5[%c0_67, %c0_68] : memref<8x108xbf16, #tpu.memory_space<vmem>>, vector<8x108xbf16>
    %c0_69 = arith.constant 0 : index
    %c0_70 = arith.constant 0 : index
    %61 = vector.load %arg10[%c0_69, %c0_70] : memref<108x512xbf16, #tpu.memory_space<vmem>>, vector<108x512xbf16>
    %cst = arith.constant dense<0.000000e+00> : vector<8x512xf32>
    %62 = tpu.matmul %60, %61, %cst {dimension_numbers = #tpu.dot_dimension_numbers<[1], [0], [0], [1], [0, 0, 1, 1], [], []>} : vector<8x108xbf16>, vector<108x512xbf16>, vector<8x512xf32> -> vector<8x512xf32>
    %c0_i32 = arith.constant 0 : i32
    %63 = arith.cmpi eq, %arg1, %c0_i32 : i32
    %64 = arith.extui %63 : i1 to i32
    %c0_i32_71 = arith.constant 0 : i32
    %65 = arith.cmpi ne, %64, %c0_i32_71 : i32
    scf.if %65 {
      %c0_i32_73 = arith.constant 0 : i32
      %69 = arith.cmpi eq, %arg2, %c0_i32_73 : i32
      %70 = arith.extui %69 : i1 to i32
      %c0_i32_74 = arith.constant 0 : i32
      %71 = arith.cmpi ne, %70, %c0_i32_74 : i32
      scf.if %71 {
        %cst_93 = arith.constant 0.000000e+00 : f32
        %95 = vector.broadcast %cst_93 : f32 to vector<2x8x1xf32>
        %c0_94 = arith.constant 0 : index
        %c0_95 = arith.constant 0 : index
        %c0_96 = arith.constant 0 : index
        %96 = vector.load %arg11[%c0_94, %c0_95, %c0_96] : memref<2x8x1xf32, #tpu.memory_space<vmem>>, vector<2x8x1xf32>
        tpu.vector_store %arg11[%c0_94, %c0_95, %c0_96], %95 {strides = array<i32>} : memref<2x8x1xf32, #tpu.memory_space<vmem>>, vector<2x8x1xf32>,
      } else {
      }
      %c0_75 = arith.constant 0 : index
      %c0_76 = arith.constant 0 : index
      %72 = vector.load %arg7[%c0_75, %c0_76] : memref<1x512xf32, #tpu.memory_space<vmem>>, vector<1x512xf32>
      %73 = vector.broadcast %72 : vector<1x512xf32> to vector<8x512xf32>
      %74 = arith.mulf %62, %73 : vector<8x512xf32>
      %c0_77 = arith.constant 0 : index
      %c0_78 = arith.constant 0 : index
      %c0_79 = arith.constant 0 : index
      %75 = vector.load %arg11[%c0_77, %c0_78, %c0_79] : memref<2x8x1xf32, #tpu.memory_space<vmem>>, vector<1x8x1xf32>
      %76 = vector.shape_cast %75 : vector<1x8x1xf32> to vector<8x1xf32>
      %cst_80 = arith.constant dense<0.000000e+00> : vector<8xf32>
      %77 = vector.multi_reduction <add>, %74, %cst_80 [1] : vector<8x512xf32> to vector<8xf32>
      %78 = vector.shape_cast %77 : vector<8xf32> to vector<8x1xf32>
      %79 = arith.addf %76, %78 : vector<8x1xf32>
      %c0_81 = arith.constant 0 : index
      %c0_82 = arith.constant 0 : index
      %c0_83 = arith.constant 0 : index
      %80 = vector.load %arg11[%c0_81, %c0_82, %c0_83] : memref<2x8x1xf32, #tpu.memory_space<vmem>>, vector<1x8x1xf32>
      %81 = vector.shape_cast %80 : vector<1x8x1xf32> to vector<8x1xf32>
      %82 = vector.shape_cast %79 : vector<8x1xf32> to vector<1x8x1xf32>
      tpu.vector_store %arg11[%c0_81, %c0_82, %c0_83], %82 {strides = array<i32>} : memref<2x8x1xf32, #tpu.memory_space<vmem>>, vector<1x8x1xf32>,
      %c1_84 = arith.constant 1 : index
      %c0_85 = arith.constant 0 : index
      %c0_86 = arith.constant 0 : index
      %83 = vector.load %arg11[%c1_84, %c0_85, %c0_86] : memref<2x8x1xf32, #tpu.memory_space<vmem>>, vector<1x8x1xf32>
      %84 = vector.shape_cast %83 : vector<1x8x1xf32> to vector<8x1xf32>
      %85 = arith.mulf %74, %62 : vector<8x512xf32>
      %cst_87 = arith.constant dense<0.000000e+00> : vector<8xf32>
      %86 = vector.multi_reduction <add>, %85, %cst_87 [1] : vector<8x512xf32> to vector<8xf32>
      %87 = vector.shape_cast %86 : vector<8xf32> to vector<8x1xf32>
      %88 = arith.addf %84, %87 : vector<8x1xf32>
      %c1_88 = arith.constant 1 : index
      %c0_89 = arith.constant 0 : index
      %c0_90 = arith.constant 0 : index
      %89 = vector.load %arg11[%c1_88, %c0_89, %c0_90] : memref<2x8x1xf32, #tpu.memory_space<vmem>>, vector<1x8x1xf32>
      %90 = vector.shape_cast %89 : vector<1x8x1xf32> to vector<8x1xf32>
      %91 = vector.shape_cast %88 : vector<8x1xf32> to vector<1x8x1xf32>
      tpu.vector_store %arg11[%c1_88, %c0_89, %c0_90], %91 {strides = array<i32>} : memref<2x8x1xf32, #tpu.memory_space<vmem>>, vector<1x8x1xf32>,
      %c1_i32_91 = arith.constant 1 : i32
      %92 = arith.cmpi eq, %arg2, %c1_i32_91 : i32
      %93 = arith.extui %92 : i1 to i32
      %c0_i32_92 = arith.constant 0 : i32
      %94 = arith.cmpi ne, %93, %c0_i32_92 : i32
      scf.if %94 {
        %c0_93 = arith.constant 0 : index
        %c0_94 = arith.constant 0 : index
        %c0_95 = arith.constant 0 : index
        %95 = vector.load %arg11[%c0_93, %c0_94, %c0_95] : memref<2x8x1xf32, #tpu.memory_space<vmem>>, vector<1x8x1xf32>
        %96 = vector.shape_cast %95 : vector<1x8x1xf32> to vector<8x1xf32>
        %cst_96 = arith.constant 0.001953125 : f32
        %97 = vector.broadcast %cst_96 : f32 to vector<8x1xf32>
        %98 = arith.mulf %96, %97 : vector<8x1xf32>
        %c1_97 = arith.constant 1 : index
        %c0_98 = arith.constant 0 : index
        %c0_99 = arith.constant 0 : index
        %99 = vector.load %arg11[%c1_97, %c0_98, %c0_99] : memref<2x8x1xf32, #tpu.memory_space<vmem>>, vector<1x8x1xf32>
        %100 = vector.shape_cast %99 : vector<1x8x1xf32> to vector<8x1xf32>
        %cst_100 = arith.constant 0.001953125 : f32
        %101 = vector.broadcast %cst_100 : f32 to vector<8x1xf32>
        %102 = arith.mulf %100, %101 : vector<8x1xf32>
        %103 = arith.mulf %98, %98 : vector<8x1xf32>
        %104 = arith.subf %102, %103 : vector<8x1xf32>
        %cst_101 = arith.constant 0.000000e+00 : f32
        %105 = vector.broadcast %cst_101 : f32 to vector<8x1xf32>
        %106 = arith.maximumf %104, %105 : vector<8x1xf32>
        %c0_102 = arith.constant 0 : index
        %c0_103 = arith.constant 0 : index
        %c0_104 = arith.constant 0 : index
        %107 = vector.load %arg6[%c0_102, %c0_103, %c0_104] : memref<2x8x1xf32, #tpu.memory_space<vmem>>, vector<1x8x1xf32>
        %108 = vector.shape_cast %107 : vector<1x8x1xf32> to vector<8x1xf32>
        %cst_105 = arith.constant 9.99999974E-6 : f32
        %109 = vector.broadcast %cst_105 : f32 to vector<8x1xf32>
        %110 = arith.addf %106, %109 : vector<8x1xf32>
        %111 = math.rsqrt %110 : vector<8x1xf32>
        %112 = arith.mulf %108, %111 : vector<8x1xf32>
        %c0_106 = arith.constant 0 : index
        %c0_107 = arith.constant 0 : index
        %c0_108 = arith.constant 0 : index
        %113 = vector.load %arg11[%c0_106, %c0_107, %c0_108] : memref<2x8x1xf32, #tpu.memory_space<vmem>>, vector<1x8x1xf32>
        %114 = vector.shape_cast %113 : vector<1x8x1xf32> to vector<8x1xf32>
        %115 = vector.shape_cast %112 : vector<8x1xf32> to vector<1x8x1xf32>
        tpu.vector_store %arg11[%c0_106, %c0_107, %c0_108], %115 {strides = array<i32>} : memref<2x8x1xf32, #tpu.memory_space<vmem>>, vector<1x8x1xf32>,
        %c1_109 = arith.constant 1 : index
        %c0_110 = arith.constant 0 : index
        %c0_111 = arith.constant 0 : index
        %116 = vector.load %arg6[%c1_109, %c0_110, %c0_111] : memref<2x8x1xf32, #tpu.memory_space<vmem>>, vector<1x8x1xf32>
        %117 = vector.shape_cast %116 : vector<1x8x1xf32> to vector<8x1xf32>
        %118 = arith.mulf %98, %112 : vector<8x1xf32>
        %119 = arith.subf %117, %118 : vector<8x1xf32>
        %c1_112 = arith.constant 1 : index
        %c0_113 = arith.constant 0 : index
        %c0_114 = arith.constant 0 : index
        %120 = vector.load %arg11[%c1_112, %c0_113, %c0_114] : memref<2x8x1xf32, #tpu.memory_space<vmem>>, vector<1x8x1xf32>
        %121 = vector.shape_cast %120 : vector<1x8x1xf32> to vector<8x1xf32>
        %122 = vector.shape_cast %119 : vector<8x1xf32> to vector<1x8x1xf32>
        tpu.vector_store %arg11[%c1_112, %c0_113, %c0_114], %122 {strides = array<i32>} : memref<2x8x1xf32, #tpu.memory_space<vmem>>, vector<1x8x1xf32>,
      } else {
      }
    } else {
    }
    %c1_i32 = arith.constant 1 : i32
    %66 = arith.cmpi eq, %arg1, %c1_i32 : i32
    %67 = arith.extui %66 : i1 to i32
    %c0_i32_72 = arith.constant 0 : i32
    %68 = arith.cmpi ne, %67, %c0_i32_72 : i32
    scf.if %68 {
      %c0_73 = arith.constant 0 : index
      %c0_74 = arith.constant 0 : index
      %c0_75 = arith.constant 0 : index
      %69 = vector.load %arg11[%c0_73, %c0_74, %c0_75] : memref<2x8x1xf32, #tpu.memory_space<vmem>>, vector<1x8x1xf32>
      %70 = vector.shape_cast %69 : vector<1x8x1xf32> to vector<8x1xf32>
      %71 = vector.broadcast %70 : vector<8x1xf32> to vector<8x512xf32>
      %72 = arith.mulf %62, %71 : vector<8x512xf32>
      %c1_76 = arith.constant 1 : index
      %c0_77 = arith.constant 0 : index
      %c0_78 = arith.constant 0 : index
      %73 = vector.load %arg11[%c1_76, %c0_77, %c0_78] : memref<2x8x1xf32, #tpu.memory_space<vmem>>, vector<1x8x1xf32>
      %74 = vector.shape_cast %73 : vector<1x8x1xf32> to vector<8x1xf32>
      %75 = vector.broadcast %74 : vector<8x1xf32> to vector<8x512xf32>
      %76 = arith.addf %72, %75 : vector<8x512xf32>
      %cst_79 = arith.constant 0.000000e+00 : f32
      %77 = vector.broadcast %cst_79 : f32 to vector<8x512xf32>
      %78 = arith.maximumf %76, %77 : vector<8x512xf32>
      %c0_80 = arith.constant 0 : index
      %c0_81 = arith.constant 0 : index
      %c0_82 = arith.constant 0 : index
      %79 = vector.load %arg8[%c0_80, %c0_81, %c0_82] : memref<1x8x512xf32, #tpu.memory_space<vmem>>, vector<1x8x512xf32>
      %80 = vector.shape_cast %79 : vector<1x8x512xf32> to vector<8x512xf32>
      %81 = vector.shape_cast %78 : vector<8x512xf32> to vector<1x8x512xf32>
      tpu.vector_store %arg8[%c0_80, %c0_81, %c0_82], %81 {strides = array<i32>} : memref<1x8x512xf32, #tpu.memory_space<vmem>>, vector<1x8x512xf32>,
    } else {
    }
    return
  }
  func.func @transform_0(%arg0: i32, %arg1: i32, %arg2: i32) -> (i32, i32, i32) {
    %c0_i32 = arith.constant 0 : i32
    %c0_i32_0 = arith.constant 0 : i32
    return %arg0, %c0_i32, %arg2 : i32, i32, i32
  }
  func.func @transform_1(%arg0: i32, %arg1: i32, %arg2: i32) -> (i32, i32, i32) {
    %c1_i32 = arith.constant 1 : i32
    %0 = arith.addi %arg2, %c1_i32 : i32
    %c1_i32_0 = arith.constant 1 : i32
    %1 = arith.minsi %0, %c1_i32_0 : i32
    %c0_i32 = arith.constant 0 : i32
    %c0_i32_1 = arith.constant 0 : i32
    return %arg0, %c0_i32, %1 : i32, i32, i32
  }
  func.func @transform_2(%arg0: i32, %arg1: i32, %arg2: i32) -> (i32, i32) {
    %c0_i32 = arith.constant 0 : i32
    %c0_i32_0 = arith.constant 0 : i32
    %c0_i32_1 = arith.constant 0 : i32
    return %c0_i32, %c0_i32_0 : i32, i32
  }
  func.func @transform_3(%arg0: i32, %arg1: i32, %arg2: i32) -> (i32, i32, i32) {
    %c0_i32 = arith.constant 0 : i32
    %c0_i32_0 = arith.constant 0 : i32
    %c0_i32_1 = arith.constant 0 : i32
    %c0_i32_2 = arith.constant 0 : i32
    return %c0_i32, %c0_i32_0, %c0_i32_1 : i32, i32, i32
  }
  func.func @transform_4(%arg0: i32, %arg1: i32, %arg2: i32) -> (i32, i32) {
    %c0_i32 = arith.constant 0 : i32
    %c0_i32_0 = arith.constant 0 : i32
    return %c0_i32, %arg2 : i32, i32
  }
  func.func @transform_5(%arg0: i32, %arg1: i32, %arg2: i32) -> (i32, i32, i32) {
    %0 = arith.muli %arg2, %arg1 : i32
    %c0_i32 = arith.constant 0 : i32
    %c0_i32_0 = arith.constant 0 : i32
    return %arg0, %c0_i32, %0 : i32, i32, i32
  }
}

</mosaic_0001>

<llo_original>
// kernel: single_conv_forward.1
$region0: #{single_conv_forward.1}
  #allocation0 [shape = 'u32[]', space=smem, size = 0x4, offset = 0x4, fixed_abs, tag = 'smem constant byte address 0x4 - core index']
  #allocation1 [shape = 'u32[144,128]{1,0:T(1,128)}', space=vmem, size = 0x12000, scoped, tag = 'internal scratch']
  #allocation2 [shape = 'bf16[4,1024]{1,0:T(4,128)(2,1)}', space=vmem, size = 0x2000, scoped, tag = 'scratch operand']
  #allocation3 [shape = 'bf16[108,512]{1,0:T(8,128)(2,1)}', space=vmem, size = 0x1c000, scoped, tag = 'scratch operand']
  #allocation4 [shape = 'f32[2,8,1]{2,1,0:T(8,128)}', space=vmem, size = 0x2000, scoped, tag = 'scratch operand']
  %s0 = inlined_call_operand.vmem [shape: bf16[2,4,1024], index: 0, kind: input, shape index: {}, may-alias: {0,1}]
  %s1 = inlined_call_operand.vmem [shape: bf16[2,4,1024], index: 1, kind: input, shape index: {}, may-alias: {0,1}]
  %s2 = inlined_call_operand.vmem [shape: bf16[8,108], index: 2, kind: input, shape index: {}]
  %s3 = inlined_call_operand.vmem [shape: f32[2,8,1], index: 3, kind: input, shape index: {}]
  %s4 = inlined_call_operand.vmem [shape: f32[1,1024], index: 4, kind: input, shape index: {}]
  %s5 = inlined_call_operand.vmem [shape: f32[2,8,1024], index: 5, kind: output, shape index: {}]
  %s6 = sld [smem:[#allocation0]]
  $region69: #{single_conv_forward.1} parent=0
    _
  %s8 = ssub.s32 1, %s6
  %s9 = scalar_select 0, %s8, %s6
  loop: start=0, step=1, limit=10
  $region2: #{single_conv_forward.1} parent=0 // loop_pre_header
    _
  $region3: #{single_conv_forward.1} parent=0 // loop_header
    %s11 = sphi 0, %s15
    %p12 = scmp.ge.s32.totalorder %s11, 10
    %s18 = sphi 0, %s37
    %s19 = sphi 0, %s33
    %s20 = sphi 0, %s29
    %s21 = sphi 0, %s18
    %s22 = sphi 0, %s19
    %s23 = sphi 0, %s20
    %s24 = sphi 0, %s21
    %s25 = sphi 0, %s22
    %s26 = sphi 0, %s23
    %s42 = sphi 0, %s44
    %s45 = sphi 0, %s42
    %s46 = sphi 0, %s45
    %s62 = sphi 0, %s46
    %s76 = sphi 0, %s78
    %s79 = sphi 0, %s76
    %s80 = sphi 0, %s79
    %s96 = sphi 0, %s80
    %s100 = sphi 0, %s100
    %s102 = sphi 0, %s100
    %s103 = sphi 0, %s102
    %s117 = sphi 0, %s103
    %s121 = sphi 0, %s121
    %s123 = sphi 0, %s121
    %s124 = sphi 0, %s123
    %s138 = sphi 0, %s124
    %s144 = sphi 0, %s146
    %s147 = sphi 0, %s144
    %s148 = sphi 0, %s147
    %s164 = sphi 0, %s148
    %s174 = sphi 0, %s176
    %s177 = sphi 0, %s174
    %s178 = sphi 0, %s177
    %s194 = sphi 0, %s178
  $region4: #{single_conv_forward.1} parent=0 // loop_header_branch
    %14 = sbr.rel (%p12) target = $region8
  $region5: #{single_conv_forward.1} parent=0 // loop_body
    %s16 = ssub.s32 %s11, 1
    %s17 = ssub.s32 %s11, 2
    %s27 = sadd.s32 1, %s20
    %p28 = scmp.ge.s32.totalorder %s27, 2
    %s29 = scalar_select %p28, 0, %s27
    %s30 = sadd.s32 1, %s19
    %s31 = scalar_select %p28, %s30, %s19
    %p32 = scmp.ge.s32.totalorder %s31, 2
    %s33 = scalar_select %p32, 0, %s31
    %s34 = sadd.s32 1, %s18
    %s35 = scalar_select %p32, %s34, %s18
    %p36 = scmp.ge.s32.totalorder %s35, 2
    %s37 = scalar_select %p36, 0, %s35
    %s38 = ssub.s32 %s18, %s37
    %s39 = ssub.s32 %s20, %s29
    %s40 = sor.u32 %s38, %s39
    %p41 = scmp.eq.s32.totalorder %s40, 0
    %s43 = sadd.s32 %s42, 1
    %s44 = scalar_select %p41, %s42, %s43
    %p47 = pneg %p41
    %p48 = scmp.eq.s32.totalorder %s11, 7
    %p49 = por %p47, %p48
    %p50 = scmp.ne.s32.totalorder %s42, %s45
    %p51 = scmp.eq.s32.totalorder %s11, 0
    %p52 = por %p50, %p51
    %p53 = scmp.ne.s32.totalorder %s42, %s45
    %p54 = scmp.eq.s32.totalorder %s16, 7
    %p55 = por %p53, %p54
    %p56 = scmp.ne.s32.totalorder %s45, %s46
    %p57 = scmp.eq.s32.totalorder %s16, 0
    %p58 = por %p56, %p57
    %p59 = scmp.ne.s32.totalorder %s45, %s46
    %p60 = scmp.eq.s32.totalorder %s17, 7
    %p61 = por %p59, %p60
    %p63 = scmp.ne.s32.totalorder %s46, %s62
    %p64 = scmp.eq.s32.totalorder %s17, 0
    %p65 = por %p63, %p64
    %s66 = sadd.s32 %s20, 1
    %p67 = scmp.lt.s32.totalorder %s66, 1
    %s68 = scalar_select %p67, %s66, 1
    %s69 = sadd.s32 %s29, 1
    %p70 = scmp.lt.s32.totalorder %s69, 1
    %s71 = scalar_select %p70, %s69, 1
    %s72 = ssub.s32 %s18, %s37
    %s73 = ssub.s32 %s68, %s71
    %s74 = sor.u32 %s72, %s73
    %p75 = scmp.eq.s32.totalorder %s74, 0
    %s77 = sadd.s32 %s76, 1
    %s78 = scalar_select %p75, %s76, %s77
    %p81 = pneg %p75
    %p82 = scmp.eq.s32.totalorder %s11, 7
    %p83 = por %p81, %p82
    %p84 = scmp.ne.s32.totalorder %s76, %s79
    %p85 = scmp.eq.s32.totalorder %s11, 0
    %p86 = por %p84, %p85
    %p87 = scmp.ne.s32.totalorder %s76, %s79
    %p88 = scmp.eq.s32.totalorder %s16, 7
    %p89 = por %p87, %p88
    %p90 = scmp.ne.s32.totalorder %s79, %s80
    %p91 = scmp.eq.s32.totalorder %s16, 0
    %p92 = por %p90, %p91
    %p93 = scmp.ne.s32.totalorder %s79, %s80
    %p94 = scmp.eq.s32.totalorder %s17, 7
    %p95 = por %p93, %p94
    %p97 = scmp.ne.s32.totalorder %s80, %s96
    %p98 = scmp.eq.s32.totalorder %s17, 0
    %p99 = por %p97, %p98
    %s101 = sadd.s32 %s100, 1
    %p104 = scmp.eq.s32.totalorder %s11, 7
    %p105 = scmp.ne.s32.totalorder %s100, %s102
    %p106 = scmp.eq.s32.totalorder %s11, 0
    %p107 = por %p105, %p106
    %p108 = scmp.ne.s32.totalorder %s100, %s102
    %p109 = scmp.eq.s32.totalorder %s16, 7
    %p110 = por %p108, %p109
    %p111 = scmp.ne.s32.totalorder %s102, %s103
    %p112 = scmp.eq.s32.totalorder %s16, 0
    %p113 = por %p111, %p112
    %p114 = scmp.ne.s32.totalorder %s102, %s103
    %p115 = scmp.eq.s32.totalorder %s17, 7
    %p116 = por %p114, %p115
    %p118 = scmp.ne.s32.totalorder %s103, %s117
    %p119 = scmp.eq.s32.totalorder %s17, 0
    %p120 = por %p118, %p119
    %s122 = sadd.s32 %s121, 1
    %p125 = scmp.eq.s32.totalorder %s11, 7
    %p126 = scmp.ne.s32.totalorder %s121, %s123
    %p127 = scmp.eq.s32.totalorder %s11, 0
    %p128 = por %p126, %p127
    %p129 = scmp.ne.s32.totalorder %s121, %s123
    %p130 = scmp.eq.s32.totalorder %s16, 7
    %p131 = por %p129, %p130
    %p132 = scmp.ne.s32.totalorder %s123, %s124
    %p133 = scmp.eq.s32.totalorder %s16, 0
    %p134 = por %p132, %p133
    %p135 = scmp.ne.s32.totalorder %s123, %s124
    %p136 = scmp.eq.s32.totalorder %s17, 7
    %p137 = por %p135, %p136
    %p139 = scmp.ne.s32.totalorder %s124, %s138
    %p140 = scmp.eq.s32.totalorder %s17, 0
    %p141 = por %p139, %p140
    %s142 = ssub.s32 %s20, %s29
    %p143 = scmp.eq.s32.totalorder %s142, 0
    %s145 = sadd.s32 %s144, 1
    %s146 = scalar_select %p143, %s144, %s145
    %p149 = pneg %p143
    %p150 = scmp.eq.s32.totalorder %s11, 7
    %p151 = por %p149, %p150
    %p152 = scmp.ne.s32.totalorder %s144, %s147
    %p153 = scmp.eq.s32.totalorder %s11, 0
    %p154 = por %p152, %p153
    %p155 = scmp.ne.s32.totalorder %s144, %s147
    %p156 = scmp.eq.s32.totalorder %s16, 7
    %p157 = por %p155, %p156
    %p158 = scmp.ne.s32.totalorder %s147, %s148
    %p159 = scmp.eq.s32.totalorder %s16, 0
    %p160 = por %p158, %p159
    %p161 = scmp.ne.s32.totalorder %s147, %s148
    %p162 = scmp.eq.s32.totalorder %s17, 7
    %p163 = por %p161, %p162
    %p165 = scmp.ne.s32.totalorder %s148, %s164
    %p166 = scmp.eq.s32.totalorder %s17, 0
    %p167 = por %p165, %p166
    %s168 = smul.u32 %s20, %s19
    %s169 = smul.u32 %s29, %s33
    %s170 = ssub.s32 %s18, %s37
    %s171 = ssub.s32 %s168, %s169
    %s172 = sor.u32 %s170, %s171
    %p173 = scmp.eq.s32.totalorder %s172, 0
    %s175 = sadd.s32 %s174, 1
    %s176 = scalar_select %p173, %s174, %s175
    %p179 = pneg %p173
    %p180 = scmp.eq.s32.totalorder %s11, 7
    %p181 = por %p179, %p180
    %p182 = scmp.ne.s32.totalorder %s174, %s177
    %p183 = scmp.eq.s32.totalorder %s11, 0
    %p184 = por %p182, %p183
    %p185 = scmp.ne.s32.totalorder %s174, %s177
    %p186 = scmp.eq.s32.totalorder %s16, 7
    %p187 = por %p185, %p186
    %p188 = scmp.ne.s32.totalorder %s177, %s178
    %p189 = scmp.eq.s32.totalorder %s16, 0
    %p190 = por %p188, %p189
    %p191 = scmp.ne.s32.totalorder %s177, %s178
    %p192 = scmp.eq.s32.totalorder %s17, 7
    %p193 = por %p191, %p192
    %p195 = scmp.ne.s32.totalorder %s178, %s194
    %p196 = scmp.eq.s32.totalorder %s17, 0
    %p197 = por %p195, %p196
    %p198 = scmp.le.s32.totalorder 1, %s11
    %p199 = scmp.lt.s32.totalorder %s11, 9
    %p200 = pnand %p198, %p199
    %p201 = pneg %p200
    // Predicated region
    $region9: #{single_conv_forward.1} parent=5 // pred_check
      _
    $region10: #{single_conv_forward.1} parent=5 // pred_check_branch
      %203 = sbr.rel (%p200) target = $region12
    $region11: #{single_conv_forward.1} parent=5 // pred_region
      %s204 = ssub.s32 %s11, 1
      // Predicated region
      $region13: #{single_conv_forward.1} parent=11 // pred_check
        %p205 = pneg %p113
      $region14: #{single_conv_forward.1} parent=11 // pred_check_branch
        %207 = sbr.rel (%p205) target = $region16
      $region15: #{single_conv_forward.1} parent=11 // pred_region
        _
      $region16: #{single_conv_forward.1} parent=11 // pred_fallthru
        _
      // Predicated region
      $region17: #{single_conv_forward.1} parent=11 // pred_check
        %p208 = pneg %p134
      $region18: #{single_conv_forward.1} parent=11 // pred_check_branch
        %210 = sbr.rel (%p208) target = $region20
      $region19: #{single_conv_forward.1} parent=11 // pred_region
        _
      $region20: #{single_conv_forward.1} parent=11 // pred_fallthru
        _
    $region12: #{single_conv_forward.1} parent=5 // pred_fallthru
      _
    %p211 = scmp.lt.s32.totalorder %s11, 8
    // Predicated region
    $region21: #{single_conv_forward.1} parent=5 // pred_check
      %p212 = pneg %p211
    $region22: #{single_conv_forward.1} parent=5 // pred_check_branch
      %214 = sbr.rel (%p212) target = $region24
    $region23: #{single_conv_forward.1} parent=5 // pred_region
      // Predicated region
      $region25: #{single_conv_forward.1} parent=23 // pred_check
        %p215 = pneg %p52
      $region26: #{single_conv_forward.1} parent=23 // pred_check_branch
        %217 = sbr.rel (%p215) target = $region28
      $region27: #{single_conv_forward.1} parent=23 // pred_region
        %s218 = smul.u32 4, %s20
        %p219 = scmp.lt.s32.totalorder %s18, 1
        %s220 = scalar_select %p219, %s18, 1
        %p221 = scmp.lt.s32.totalorder %s218, 7
        %s222 = scalar_select %p221, %s218, 7
        %s223 = smul.addr %s220, 8
        %s224 = sadd.s32 %s222, %s223
        %s225 = smul.addr %s224, 2
        %s226 = scalar_lea.vmem %s0, %s225
        %s227 = smul.u32 4, %s20
      $region28: #{single_conv_forward.1} parent=23 // pred_fallthru
        _
      // Predicated region
      $region29: #{single_conv_forward.1} parent=23 // pred_check
        %p228 = pneg %p86
      $region30: #{single_conv_forward.1} parent=23 // pred_check_branch
        %230 = sbr.rel (%p228) target = $region32
      $region31: #{single_conv_forward.1} parent=23 // pred_region
        %s231 = sadd.s32 %s20, 1
        %p232 = scmp.lt.s32.totalorder %s231, 1
        %s233 = scalar_select %p232, %s231, 1
        %s234 = smul.u32 4, %s233
        %p235 = scmp.lt.s32.totalorder %s18, 1
        %s236 = scalar_select %p235, %s18, 1
        %p237 = scmp.lt.s32.totalorder %s234, 7
        %s238 = scalar_select %p237, %s234, 7
        %s239 = smul.addr %s236, 8
        %s240 = sadd.s32 %s238, %s239
        %s241 = smul.addr %s240, 2
        %s242 = scalar_lea.vmem %s1, %s241
        %s243 = sadd.s32 %s20, 1
        %p244 = scmp.lt.s32.totalorder %s243, 1
        %s245 = scalar_select %p244, %s243, 1
        %s246 = smul.u32 4, %s245
      $region32: #{single_conv_forward.1} parent=23 // pred_fallthru
        _
      // Predicated region
      $region33: #{single_conv_forward.1} parent=23 // pred_check
        %p247 = pneg %p154
      $region34: #{single_conv_forward.1} parent=23 // pred_check_branch
        %249 = sbr.rel (%p247) target = $region36
      $region35: #{single_conv_forward.1} parent=23 // pred_region
        %s250 = smul.u32 4, %s20
        %p251 = scmp.lt.s32.totalorder %s250, 7
        %s252 = scalar_select %p251, %s250, 7
        %s253 = scalar_lea.vmem %s4, %s252
        %s254 = smul.u32 4, %s20
      $region36: #{single_conv_forward.1} parent=23 // pred_fallthru
        _
    $region24: #{single_conv_forward.1} parent=5 // pred_fallthru
      _
    %p255 = scmp.le.s32.totalorder 1, %s11
    %p256 = scmp.lt.s32.totalorder %s11, 9
    %p257 = pnand %p255, %p256
    %p258 = pneg %p257
    // Predicated region
    $region37: #{single_conv_forward.1} parent=5 // pred_check
      _
    $region38: #{single_conv_forward.1} parent=5 // pred_check_branch
      %260 = sbr.rel (%p257) target = $region40
    $region39: #{single_conv_forward.1} parent=5 // pred_region
      %s261 = ssub.s32 %s11, 1
      %s262 = smul.u32 4, %s23
      %p263 = scmp.lt.s32.totalorder %s21, 1
      %s264 = scalar_select %p263, %s21, 1
      %p265 = scmp.lt.s32.totalorder %s262, 7
      %s266 = scalar_select %p265, %s262, 7
      %s267 = smul.addr %s264, 8
      %s268 = sadd.s32 %s266, %s267
      %s269 = smul.addr %s268, 2
      %s270 = scalar_lea.vmem %s0, %s269
      %p271 = pneg %p58
      %p272 = pneg %p55
      %s273 = sadd.s32 %s23, 1
      %p274 = scmp.lt.s32.totalorder %s273, 1
      %s275 = scalar_select %p274, %s273, 1
      %s276 = smul.u32 4, %s275
      %p277 = scmp.lt.s32.totalorder %s21, 1
      %s278 = scalar_select %p277, %s21, 1
      %p279 = scmp.lt.s32.totalorder %s276, 7
      %s280 = scalar_select %p279, %s276, 7
      %s281 = smul.addr %s278, 8
      %s282 = sadd.s32 %s280, %s281
      %s283 = smul.addr %s282, 2
      %s284 = scalar_lea.vmem %s1, %s283
      %p285 = pneg %p92
      %p286 = pneg %p89
      %p287 = pneg %p113
      %p288 = pneg %p110
      %p289 = pneg %p134
      %p290 = pneg %p131
      %s291 = smul.u32 4, %s23
      %p292 = scmp.lt.s32.totalorder %s291, 7
      %s293 = scalar_select %p292, %s291, 7
      %s294 = scalar_lea.vmem %s4, %s293
      %p295 = pneg %p160
      %p296 = pneg %p157
      %p297 = pneg %p190
      %p298 = pneg %p187
      %s299 = smul.u32 %s23, %s22
      %s300 = smul.u32 4, %s299
      %p301 = scmp.lt.s32.totalorder %s21, 1
      %s302 = scalar_select %p301, %s21, 1
      %p303 = scmp.lt.s32.totalorder %s300, 7
      %s304 = scalar_select %p303, %s300, 7
      %s305 = smul.addr %s302, 8
      %s306 = sadd.s32 %s304, %s305
      %s307 = smul.addr %s306, 8
      %s308 = scalar_lea.vmem %s5, %s307
      %s309 = smul.u32 4, %s23
      %p310 = scmp.lt.s32.totalorder %s21, 1
      %s311 = scalar_select %p310, %s21, 1
      %p312 = scmp.lt.s32.totalorder %s309, 7
      %s313 = scalar_select %p312, %s309, 7
      %s314 = smul.addr %s311, 8
      %s315 = sadd.s32 %s313, %s314
      %s316 = smul.addr %s315, 2
      %s317 = scalar_lea.vmem %s0, %s316
      %s318 = smul.u32 4, %s23
      %s319 = sadd.s32 %s23, 1
      %p320 = scmp.lt.s32.totalorder %s319, 1
      %s321 = scalar_select %p320, %s319, 1
      %s322 = smul.u32 4, %s321
      %p323 = scmp.lt.s32.totalorder %s21, 1
      %s324 = scalar_select %p323, %s21, 1
      %p325 = scmp.lt.s32.totalorder %s322, 7
      %s326 = scalar_select %p325, %s322, 7
      %s327 = smul.addr %s324, 8
      %s328 = sadd.s32 %s326, %s327
      %s329 = smul.addr %s328, 2
      %s330 = scalar_lea.vmem %s1, %s329
      %s331 = sadd.s32 %s23, 1
      %p332 = scmp.lt.s32.totalorder %s331, 1
      %s333 = scalar_select %p332, %s331, 1
      %s334 = smul.u32 4, %s333
      %s335 = smul.u32 4, %s23
      %p336 = scmp.lt.s32.totalorder %s335, 7
      %s337 = scalar_select %p336, %s335, 7
      %s338 = scalar_lea.vmem %s4, %s337
      %s339 = smul.u32 4, %s23
      %s340 = smul.u32 %s23, %s22
      %s341 = smul.u32 4, %s340
      %p342 = scmp.lt.s32.totalorder %s21, 1
      %s343 = scalar_select %p342, %s21, 1
      %p344 = scmp.lt.s32.totalorder %s341, 7
      %s345 = scalar_select %p344, %s341, 7
      %s346 = smul.addr %s343, 8
      %s347 = sadd.s32 %s345, %s346
      %s348 = smul.addr %s347, 8
      %s349 = scalar_lea.vmem %s5, %s348
      %s350 = smul.u32 %s23, %s22
      %s351 = smul.u32 4, %s350
      %v353 = vld [vmem:[%s317] sm:$0xff]
      %354 = vst [vmem:[#allocation2] sm:$0xff] %v353
      %v355 = vld [vmem:[%s330] sm:$0xff]
      %356 = vst [vmem:[#allocation2 + $0x8] sm:$0xff] %v355
      %v357 = vld [vmem:[#allocation2] sm:$0xff]
      %v359 = vcombine.high %v357, %v357
      %v361 = vunpack.c.l.s4 1983009808
      %v362 = vunpack.c.0.s8 %v361
      %v363 = vlaneseq
      %v364 = vshrl.u32 %v363, 7
      %v365 = vsub.s32 %v362, %v364
      %v366 = vrot.slane %v357, %v365
      %v368 = vunpack.c.l.s4 1983009808
      %v369 = vunpack.c.0.s8 %v368
      %v370 = vlaneseq
      %v371 = vshrl.u32 %v370, 7
      %v372 = vsub.s32 %v369, %v371
      %v373 = vrot.slane %v359, %v372
      %376 = vst [vmem:[#allocation3] sm:$0x33] %v366
      %377 = vst [vmem:[#allocation3 + $0x8] sm:$0x33] %v373
      %v378 = vld [vmem:[#allocation2] sm:$0xff]
      %v379 = vld [vmem:[#allocation2 + $0x8] sm:$0x3]
      %v382 = vcombine.low %v378, %v378
      %v384 = vunpack.c.l.s4 1983009808
      %v385 = vunpack.c.0.s8 %v384
      %v386 = vlaneseq
      %v387 = vshrl.u32 %v386, 7
      %v388 = vsub.s32 %v385, %v387
      %v389 = vrot.slane %v382, %v388
      %v391 = vunpack.c.l.s4 1983009808
      %v392 = vunpack.c.0.s8 %v391
      %v393 = vlaneseq
      %v394 = vshrl.u32 %v393, 7
      %v395 = vsub.s32 %v392, %v394
      %v396 = vrot.slane %v378, %v395
      %v397 = vcombine.low %v379, %v379
      %v399 = vunpack.c.l.s4 1983009808
      %v400 = vunpack.c.0.s8 %v399
      %v401 = vlaneseq
      %v402 = vshrl.u32 %v401, 7
      %v403 = vsub.s32 %v400, %v402
      %v404 = vrot.slane %v397, %v403
      %405 = vrot.lane.b32.xlu0 %v389, 127
      %v406 = vpop.permute.xlu0 %405
      %407 = vrot.lane.b32.xlu0 %v396, 127
      %v408 = vpop.permute.xlu0 %407
      %409 = vrot.lane.b32.xlu0 %v404, 127
      %v410 = vpop.permute.xlu0 %409
      %v411 = vrot.slane %v406, 4
      %v412 = vrot.slane %v408, 4
      %v413 = vrot.slane %v410, 4
      %vm414 = vcmask 1043456
      %v415 = vsel %vm414, %v411, %v412
      %vm416 = vcmask 1039360
      %v417 = vsel %vm416, %v406, %v415
      %v418 = vsel %vm414, %v412, %v413
      %v419 = vsel %vm416, %v408, %v418
      %422 = vst [vmem:[#allocation3] sm:$0xcc] %v417
      %423 = vst [vmem:[#allocation3 + $0x8] sm:$0xcc] %v419
      %v424 = vld [vmem:[#allocation2] sm:$0xff]
      %v425 = vld [vmem:[#allocation2 + $0x8] sm:$0x3]
      %v428 = vcombine.high %v424, %v424
      %v430 = vunpack.c.l.s4 1983009808
      %v431 = vunpack.c.0.s8 %v430
      %v432 = vlaneseq
      %v433 = vshrl.u32 %v432, 7
      %v434 = vsub.s32 %v431, %v433
      %v435 = vrot.slane %v424, %v434
      %v437 = vunpack.c.l.s4 1983009808
      %v438 = vunpack.c.0.s8 %v437
      %v439 = vlaneseq
      %v440 = vshrl.u32 %v439, 7
      %v441 = vsub.s32 %v438, %v440
      %v442 = vrot.slane %v428, %v441
      %v444 = vunpack.c.l.s4 1983009808
      %v445 = vunpack.c.0.s8 %v444
      %v446 = vlaneseq
      %v447 = vshrl.u32 %v446, 7
      %v448 = vsub.s32 %v445, %v447
      %v449 = vrot.slane %v425, %v448
      %450 = vrot.lane.b32.xlu0 %v435, 126
      %v451 = vpop.permute.xlu0 %450
      %452 = vrot.lane.b32.xlu0 %v442, 126
      %v453 = vpop.permute.xlu0 %452
      %454 = vrot.lane.b32.xlu0 %v449, 126
      %v455 = vpop.permute.xlu0 %454
      %v456 = vrot.slane %v451, 4
      %v457 = vrot.slane %v453, 4
      %v458 = vrot.slane %v455, 4
      %v459 = vsel %vm414, %v456, %v457
      %vm460 = vcmask 1031168
      %v461 = vsel %vm460, %v451, %v459
      %v462 = vsel %vm414, %v457, %v458
      %v463 = vsel %vm460, %v453, %v462
      %466 = vst [vmem:[#allocation3 + $0x10] sm:$0x33] %v461
      %467 = vst [vmem:[#allocation3 + $0x18] sm:$0x33] %v463
      %v468 = vld [vmem:[#allocation2] sm:$0xff]
      %v469 = vld [vmem:[#allocation2 + $0x8] sm:$0x3]
      %v472 = vcombine.low %v468, %v468
      %v474 = vunpack.c.l.s4 1983009808
      %v475 = vunpack.c.0.s8 %v474
      %v476 = vlaneseq
      %v477 = vshrl.u32 %v476, 7
      %v478 = vsub.s32 %v475, %v477
      %v479 = vrot.slane %v472, %v478
      %v481 = vunpack.c.l.s4 1983009808
      %v482 = vunpack.c.0.s8 %v481
      %v483 = vlaneseq
      %v484 = vshrl.u32 %v483, 7
      %v485 = vsub.s32 %v482, %v484
      %v486 = vrot.slane %v468, %v485
      %v487 = vcombine.low %v469, %v469
      %v489 = vunpack.c.l.s4 1983009808
      %v490 = vunpack.c.0.s8 %v489
      %v491 = vlaneseq
      %v492 = vshrl.u32 %v491, 7
      %v493 = vsub.s32 %v490, %v492
      %v494 = vrot.slane %v487, %v493
      %495 = vrot.lane.b32.xlu0 %v479, 118
      %v496 = vpop.permute.xlu0 %495
      %497 = vrot.lane.b32.xlu0 %v486, 118
      %v498 = vpop.permute.xlu0 %497
      %499 = vrot.lane.b32.xlu0 %v494, 118
      %v500 = vpop.permute.xlu0 %499
      %v501 = vrot.slane %v496, 4
      %v502 = vrot.slane %v498, 4
      %v503 = vrot.slane %v500, 4
      %v504 = vsel %vm414, %v501, %v502
      %vm505 = vcmask 965632
      %v506 = vsel %vm505, %v496, %v504
      %v507 = vsel %vm414, %v502, %v503
      %v508 = vsel %vm505, %v498, %v507
      %511 = vst [vmem:[#allocation3 + $0x10] sm:$0xcc] %v506
      %512 = vst [vmem:[#allocation3 + $0x18] sm:$0xcc] %v508
      %v513 = vld [vmem:[#allocation2] sm:$0xff]
      %v514 = vld [vmem:[#allocation2 + $0x8] sm:$0x3]
      %v517 = vcombine.high %v513, %v513
      %v519 = vunpack.c.l.s4 1983009808
      %v520 = vunpack.c.0.s8 %v519
      %v521 = vlaneseq
      %v522 = vshrl.u32 %v521, 7
      %v523 = vsub.s32 %v520, %v522
      %v524 = vrot.slane %v513, %v523
      %v526 = vunpack.c.l.s4 1983009808
      %v527 = vunpack.c.0.s8 %v526
      %v528 = vlaneseq
      %v529 = vshrl.u32 %v528, 7
      %v530 = vsub.s32 %v527, %v529
      %v531 = vrot.slane %v517, %v530
      %v533 = vunpack.c.l.s4 1983009808
      %v534 = vunpack.c.0.s8 %v533
      %v535 = vlaneseq
      %v536 = vshrl.u32 %v535, 7
      %v537 = vsub.s32 %v534, %v536
      %v538 = vrot.slane %v514, %v537
      %539 = vrot.lane.b32.xlu0 %v524, 117
      %v540 = vpop.permute.xlu0 %539
      %541 = vrot.lane.b32.xlu0 %v531, 117
      %v542 = vpop.permute.xlu0 %541
      %543 = vrot.lane.b32.xlu0 %v538, 117
      %v544 = vpop.permute.xlu0 %543
      %v545 = vrot.slane %v540, 4
      %v546 = vrot.slane %v542, 4
      %v547 = vrot.slane %v544, 4
      %v548 = vsel %vm414, %v545, %v546
      %vm549 = vcmask 957440
      %v550 = vsel %vm549, %v540, %v548
      %v551 = vsel %vm414, %v546, %v547
      %v552 = vsel %vm549, %v542, %v551
      %555 = vst [vmem:[#allocation3 + $0x20] sm:$0x33] %v550
      %556 = vst [vmem:[#allocation3 + $0x28] sm:$0x33] %v552
      %v557 = vld [vmem:[#allocation2] sm:$0xff]
      %v558 = vld [vmem:[#allocation2 + $0x8] sm:$0x3]
      %v561 = vcombine.low %v557, %v557
      %v563 = vunpack.c.l.s4 1983009808
      %v564 = vunpack.c.0.s8 %v563
      %v565 = vlaneseq
      %v566 = vshrl.u32 %v565, 7
      %v567 = vsub.s32 %v564, %v566
      %v568 = vrot.slane %v561, %v567
      %v570 = vunpack.c.l.s4 1983009808
      %v571 = vunpack.c.0.s8 %v570
      %v572 = vlaneseq
      %v573 = vshrl.u32 %v572, 7
      %v574 = vsub.s32 %v571, %v573
      %v575 = vrot.slane %v557, %v574
      %v576 = vcombine.low %v558, %v558
      %v578 = vunpack.c.l.s4 1983009808
      %v579 = vunpack.c.0.s8 %v578
      %v580 = vlaneseq
      %v581 = vshrl.u32 %v580, 7
      %v582 = vsub.s32 %v579, %v581
      %v583 = vrot.slane %v576, %v582
      %584 = vrot.lane.b32.xlu0 %v568, 116
      %v585 = vpop.permute.xlu0 %584
      %586 = vrot.lane.b32.xlu0 %v575, 116
      %v587 = vpop.permute.xlu0 %586
      %588 = vrot.lane.b32.xlu0 %v583, 116
      %v589 = vpop.permute.xlu0 %588
      %v590 = vrot.slane %v585, 4
      %v591 = vrot.slane %v587, 4
      %v592 = vrot.slane %v589, 4
      %v593 = vsel %vm414, %v590, %v591
      %vm594 = vcmask 949248
      %v595 = vsel %vm594, %v585, %v593
      %v596 = vsel %vm414, %v591, %v592
      %v597 = vsel %vm594, %v587, %v596
      %600 = vst [vmem:[#allocation3 + $0x20] sm:$0xcc] %v595
      %601 = vst [vmem:[#allocation3 + $0x28] sm:$0xcc] %v597
      %v602 = vld [vmem:[#allocation2] sm:$0xff]
      %v603 = vld [vmem:[#allocation2 + $0x8] sm:$0x3]
      %v606 = vcombine.high %v602, %v602
      %v608 = vunpack.c.l.s4 1983009808
      %v609 = vunpack.c.0.s8 %v608
      %v610 = vlaneseq
      %v611 = vshrl.u32 %v610, 7
      %v612 = vsub.s32 %v609, %v611
      %v613 = vrot.slane %v602, %v612
      %v615 = vunpack.c.l.s4 1983009808
      %v616 = vunpack.c.0.s8 %v615
      %v617 = vlaneseq
      %v618 = vshrl.u32 %v617, 7
      %v619 = vsub.s32 %v616, %v618
      %v620 = vrot.slane %v606, %v619
      %v622 = vunpack.c.l.s4 1983009808
      %v623 = vunpack.c.0.s8 %v622
      %v624 = vlaneseq
      %v625 = vshrl.u32 %v624, 7
      %v626 = vsub.s32 %v623, %v625
      %v627 = vrot.slane %v603, %v626
      %628 = vrot.lane.b32.xlu0 %v613, 108
      %v629 = vpop.permute.xlu0 %628
      %630 = vrot.lane.b32.xlu0 %v620, 108
      %v631 = vpop.permute.xlu0 %630
      %632 = vrot.lane.b32.xlu0 %v627, 108
      %v633 = vpop.permute.xlu0 %632
      %v634 = vrot.slane %v629, 4
      %v635 = vrot.slane %v631, 4
      %v636 = vrot.slane %v633, 4
      %v637 = vsel %vm414, %v634, %v635
      %vm638 = vcmask 883712
      %v639 = vsel %vm638, %v629, %v637
      %v640 = vsel %vm414, %v635, %v636
      %v641 = vsel %vm638, %v631, %v640
      %644 = vst [vmem:[#allocation3 + $0x30] sm:$0x33] %v639
      %645 = vst [vmem:[#allocation3 + $0x38] sm:$0x33] %v641
      %v646 = vld [vmem:[#allocation2] sm:$0xff]
      %v647 = vld [vmem:[#allocation2 + $0x8] sm:$0x3]
      %v650 = vcombine.low %v646, %v646
      %v652 = vunpack.c.l.s4 1983009808
      %v653 = vunpack.c.0.s8 %v652
      %v654 = vlaneseq
      %v655 = vshrl.u32 %v654, 7
      %v656 = vsub.s32 %v653, %v655
      %v657 = vrot.slane %v650, %v656
      %v659 = vunpack.c.l.s4 1983009808
      %v660 = vunpack.c.0.s8 %v659
      %v661 = vlaneseq
      %v662 = vshrl.u32 %v661, 7
      %v663 = vsub.s32 %v660, %v662
      %v664 = vrot.slane %v646, %v663
      %v665 = vcombine.low %v647, %v647
      %v667 = vunpack.c.l.s4 1983009808
      %v668 = vunpack.c.0.s8 %v667
      %v669 = vlaneseq
      %v670 = vshrl.u32 %v669, 7
      %v671 = vsub.s32 %v668, %v670
      %v672 = vrot.slane %v665, %v671
      %673 = vrot.lane.b32.xlu0 %v657, 107
      %v674 = vpop.permute.xlu0 %673
      %675 = vrot.lane.b32.xlu0 %v664, 107
      %v676 = vpop.permute.xlu0 %675
      %677 = vrot.lane.b32.xlu0 %v672, 107
      %v678 = vpop.permute.xlu0 %677
      %v679 = vrot.slane %v674, 4
      %v680 = vrot.slane %v676, 4
      %v681 = vrot.slane %v678, 4
      %v682 = vsel %vm414, %v679, %v680
      %vm683 = vcmask 875520
      %v684 = vsel %vm683, %v674, %v682
      %v685 = vsel %vm414, %v680, %v681
      %v686 = vsel %vm683, %v676, %v685
      %689 = vst [vmem:[#allocation3 + $0x30] sm:$0xcc] %v684
      %690 = vst [vmem:[#allocation3 + $0x38] sm:$0xcc] %v686
      %v691 = vld [vmem:[#allocation2] sm:$0xff]
      %v692 = vld [vmem:[#allocation2 + $0x8] sm:$0x3]
      %v695 = vcombine.high %v691, %v691
      %v697 = vunpack.c.l.s4 1983009808
      %v698 = vunpack.c.0.s8 %v697
      %v699 = vlaneseq
      %v700 = vshrl.u32 %v699, 7
      %v701 = vsub.s32 %v698, %v700
      %v702 = vrot.slane %v691, %v701
      %v704 = vunpack.c.l.s4 1983009808
      %v705 = vunpack.c.0.s8 %v704
      %v706 = vlaneseq
      %v707 = vshrl.u32 %v706, 7
      %v708 = vsub.s32 %v705, %v707
      %v709 = vrot.slane %v695, %v708
      %v711 = vunpack.c.l.s4 1983009808
      %v712 = vunpack.c.0.s8 %v711
      %v713 = vlaneseq
      %v714 = vshrl.u32 %v713, 7
      %v715 = vsub.s32 %v712, %v714
      %v716 = vrot.slane %v692, %v715
      %717 = vrot.lane.b32.xlu0 %v702, 106
      %v718 = vpop.permute.xlu0 %717
      %719 = vrot.lane.b32.xlu0 %v709, 106
      %v720 = vpop.permute.xlu0 %719
      %721 = vrot.lane.b32.xlu0 %v716, 106
      %v722 = vpop.permute.xlu0 %721
      %v723 = vrot.slane %v718, 4
      %v724 = vrot.slane %v720, 4
      %v725 = vrot.slane %v722, 4
      %v726 = vsel %vm414, %v723, %v724
      %vm727 = vcmask 867328
      %v728 = vsel %vm727, %v718, %v726
      %v729 = vsel %vm414, %v724, %v725
      %v730 = vsel %vm727, %v720, %v729
      %733 = vst [vmem:[#allocation3 + $0x40] sm:$0x33] %v728
      %734 = vst [vmem:[#allocation3 + $0x48] sm:$0x33] %v730
      %v735 = vld [vmem:[#allocation2] sm:$0xff]
      %v736 = vld [vmem:[#allocation2 + $0x8] sm:$0x3]
      %v739 = vcombine.low %v735, %v735
      %v741 = vunpack.c.l.s4 1983009808
      %v742 = vunpack.c.0.s8 %v741
      %v743 = vlaneseq
      %v744 = vshrl.u32 %v743, 7
      %v745 = vsub.s32 %v742, %v744
      %v746 = vrot.slane %v739, %v745
      %v748 = vunpack.c.l.s4 1983009808
      %v749 = vunpack.c.0.s8 %v748
      %v750 = vlaneseq
      %v751 = vshrl.u32 %v750, 7
      %v752 = vsub.s32 %v749, %v751
      %v753 = vrot.slane %v735, %v752
      %v754 = vcombine.low %v736, %v736
      %v756 = vunpack.c.l.s4 1983009808
      %v757 = vunpack.c.0.s8 %v756
      %v758 = vlaneseq
      %v759 = vshrl.u32 %v758, 7
      %v760 = vsub.s32 %v757, %v759
      %v761 = vrot.slane %v754, %v760
      %762 = vrot.lane.b32.xlu0 %v746, 28
      %v763 = vpop.permute.xlu0 %762
      %764 = vrot.lane.b32.xlu0 %v753, 28
      %v765 = vpop.permute.xlu0 %764
      %766 = vrot.lane.b32.xlu0 %v761, 28
      %v767 = vpop.permute.xlu0 %766
      %v768 = vrot.slane %v763, 4
      %v769 = vrot.slane %v765, 4
      %v770 = vrot.slane %v767, 4
      %v771 = vsel %vm414, %v768, %v769
      %vm772 = vcmask 228352
      %v773 = vsel %vm772, %v763, %v771
      %v774 = vsel %vm414, %v769, %v770
      %v775 = vsel %vm772, %v765, %v774
      %778 = vst [vmem:[#allocation3 + $0x40] sm:$0xcc] %v773
      %779 = vst [vmem:[#allocation3 + $0x48] sm:$0xcc] %v775
      %v780 = vld [vmem:[#allocation2] sm:$0xff]
      %v781 = vld [vmem:[#allocation2 + $0x8] sm:$0x3]
      %v784 = vcombine.high %v780, %v780
      %v786 = vunpack.c.l.s4 1983009808
      %v787 = vunpack.c.0.s8 %v786
      %v788 = vlaneseq
      %v789 = vshrl.u32 %v788, 7
      %v790 = vsub.s32 %v787, %v789
      %v791 = vrot.slane %v780, %v790
      %v793 = vunpack.c.l.s4 1983009808
      %v794 = vunpack.c.0.s8 %v793
      %v795 = vlaneseq
      %v796 = vshrl.u32 %v795, 7
      %v797 = vsub.s32 %v794, %v796
      %v798 = vrot.slane %v784, %v797
      %v800 = vunpack.c.l.s4 1983009808
      %v801 = vunpack.c.0.s8 %v800
      %v802 = vlaneseq
      %v803 = vshrl.u32 %v802, 7
      %v804 = vsub.s32 %v801, %v803
      %v805 = vrot.slane %v781, %v804
      %806 = vrot.lane.b32.xlu0 %v791, 27
      %v807 = vpop.permute.xlu0 %806
      %808 = vrot.lane.b32.xlu0 %v798, 27
      %v809 = vpop.permute.xlu0 %808
      %810 = vrot.lane.b32.xlu0 %v805, 27
      %v811 = vpop.permute.xlu0 %810
      %v812 = vrot.slane %v807, 4
      %v813 = vrot.slane %v809, 4
      %v814 = vrot.slane %v811, 4
      %v815 = vsel %vm414, %v812, %v813
      %vm816 = vcmask 220160
      %v817 = vsel %vm816, %v807, %v815
      %v818 = vsel %vm414, %v813, %v814
      %v819 = vsel %vm816, %v809, %v818
      %822 = vst [vmem:[#allocation3 + $0x50] sm:$0x33] %v817
      %823 = vst [vmem:[#allocation3 + $0x58] sm:$0x33] %v819
      %v824 = vld [vmem:[#allocation2] sm:$0xff]
      %v825 = vld [vmem:[#allocation2 + $0x8] sm:$0x3]
      %v828 = vcombine.low %v824, %v824
      %v830 = vunpack.c.l.s4 1983009808
      %v831 = vunpack.c.0.s8 %v830
      %v832 = vlaneseq
      %v833 = vshrl.u32 %v832, 7
      %v834 = vsub.s32 %v831, %v833
      %v835 = vrot.slane %v828, %v834
      %v837 = vunpack.c.l.s4 1983009808
      %v838 = vunpack.c.0.s8 %v837
      %v839 = vlaneseq
      %v840 = vshrl.u32 %v839, 7
      %v841 = vsub.s32 %v838, %v840
      %v842 = vrot.slane %v824, %v841
      %v843 = vcombine.low %v825, %v825
      %v845 = vunpack.c.l.s4 1983009808
      %v846 = vunpack.c.0.s8 %v845
      %v847 = vlaneseq
      %v848 = vshrl.u32 %v847, 7
      %v849 = vsub.s32 %v846, %v848
      %v850 = vrot.slane %v843, %v849
      %851 = vrot.lane.b32.xlu0 %v835, 26
      %v852 = vpop.permute.xlu0 %851
      %853 = vrot.lane.b32.xlu0 %v842, 26
      %v854 = vpop.permute.xlu0 %853
      %855 = vrot.lane.b32.xlu0 %v850, 26
      %v856 = vpop.permute.xlu0 %855
      %v857 = vrot.slane %v852, 4
      %v858 = vrot.slane %v854, 4
      %v859 = vrot.slane %v856, 4
      %v860 = vsel %vm414, %v857, %v858
      %vm861 = vcmask 211968
      %v862 = vsel %vm861, %v852, %v860
      %v863 = vsel %vm414, %v858, %v859
      %v864 = vsel %vm861, %v854, %v863
      %867 = vst [vmem:[#allocation3 + $0x50] sm:$0xcc] %v862
      %868 = vst [vmem:[#allocation3 + $0x58] sm:$0xcc] %v864
      %v869 = vld [vmem:[#allocation2] sm:$0xff]
      %v870 = vld [vmem:[#allocation2 + $0x8] sm:$0x3]
      %v873 = vcombine.high %v869, %v869
      %v875 = vunpack.c.l.s4 1983009808
      %v876 = vunpack.c.0.s8 %v875
      %v877 = vlaneseq
      %v878 = vshrl.u32 %v877, 7
      %v879 = vsub.s32 %v876, %v878
      %v880 = vrot.slane %v869, %v879
      %v882 = vunpack.c.l.s4 1983009808
      %v883 = vunpack.c.0.s8 %v882
      %v884 = vlaneseq
      %v885 = vshrl.u32 %v884, 7
      %v886 = vsub.s32 %v883, %v885
      %v887 = vrot.slane %v873, %v886
      %v889 = vunpack.c.l.s4 1983009808
      %v890 = vunpack.c.0.s8 %v889
      %v891 = vlaneseq
      %v892 = vshrl.u32 %v891, 7
      %v893 = vsub.s32 %v890, %v892
      %v894 = vrot.slane %v870, %v893
      %895 = vrot.lane.b32.xlu0 %v880, 18
      %v896 = vpop.permute.xlu0 %895
      %897 = vrot.lane.b32.xlu0 %v887, 18
      %v898 = vpop.permute.xlu0 %897
      %899 = vrot.lane.b32.xlu0 %v894, 18
      %v900 = vpop.permute.xlu0 %899
      %v901 = vrot.slane %v896, 4
      %v902 = vrot.slane %v898, 4
      %v903 = vrot.slane %v900, 4
      %v904 = vsel %vm414, %v901, %v902
      %vm905 = vcmask 146432
      %v906 = vsel %vm905, %v896, %v904
      %v907 = vsel %vm414, %v902, %v903
      %v908 = vsel %vm905, %v898, %v907
      %911 = vst [vmem:[#allocation3 + $0x60] sm:$0x33] %v906
      %912 = vst [vmem:[#allocation3 + $0x68] sm:$0x33] %v908
      %v913 = vld [vmem:[#allocation2] sm:$0xff]
      %v914 = vld [vmem:[#allocation2 + $0x8] sm:$0x3]
      %v917 = vcombine.low %v913, %v913
      %v919 = vunpack.c.l.s4 1983009808
      %v920 = vunpack.c.0.s8 %v919
      %v921 = vlaneseq
      %v922 = vshrl.u32 %v921, 7
      %v923 = vsub.s32 %v920, %v922
      %v924 = vrot.slane %v917, %v923
      %v926 = vunpack.c.l.s4 1983009808
      %v927 = vunpack.c.0.s8 %v926
      %v928 = vlaneseq
      %v929 = vshrl.u32 %v928, 7
      %v930 = vsub.s32 %v927, %v929
      %v931 = vrot.slane %v913, %v930
      %v932 = vcombine.low %v914, %v914
      %v934 = vunpack.c.l.s4 1983009808
      %v935 = vunpack.c.0.s8 %v934
      %v936 = vlaneseq
      %v937 = vshrl.u32 %v936, 7
      %v938 = vsub.s32 %v935, %v937
      %v939 = vrot.slane %v932, %v938
      %940 = vrot.lane.b32.xlu0 %v924, 17
      %v941 = vpop.permute.xlu0 %940
      %942 = vrot.lane.b32.xlu0 %v931, 17
      %v943 = vpop.permute.xlu0 %942
      %944 = vrot.lane.b32.xlu0 %v939, 17
      %v945 = vpop.permute.xlu0 %944
      %v946 = vrot.slane %v941, 4
      %v947 = vrot.slane %v943, 4
      %v948 = vrot.slane %v945, 4
      %v949 = vsel %vm414, %v946, %v947
      %vm950 = vcmask 138240
      %v951 = vsel %vm950, %v941, %v949
      %v952 = vsel %vm414, %v947, %v948
      %v953 = vsel %vm950, %v943, %v952
      %956 = vst [vmem:[#allocation3 + $0x60] sm:$0xcc] %v951
      %957 = vst [vmem:[#allocation3 + $0x68] sm:$0xcc] %v953
      %v958 = vld [vmem:[#allocation2] sm:$0xff]
      %v959 = vld [vmem:[#allocation2 + $0x8] sm:$0x3]
      %v962 = vcombine.high %v958, %v958
      %v964 = vunpack.c.l.s4 1983009808
      %v965 = vunpack.c.0.s8 %v964
      %v966 = vlaneseq
      %v967 = vshrl.u32 %v966, 7
      %v968 = vsub.s32 %v965, %v967
      %v969 = vrot.slane %v958, %v968
      %v971 = vunpack.c.l.s4 1983009808
      %v972 = vunpack.c.0.s8 %v971
      %v973 = vlaneseq
      %v974 = vshrl.u32 %v973, 7
      %v975 = vsub.s32 %v972, %v974
      %v976 = vrot.slane %v962, %v975
      %v978 = vunpack.c.l.s4 1983009808
      %v979 = vunpack.c.0.s8 %v978
      %v980 = vlaneseq
      %v981 = vshrl.u32 %v980, 7
      %v982 = vsub.s32 %v979, %v981
      %v983 = vrot.slane %v959, %v982
      %984 = vrot.lane.b32.xlu0 %v969, 16
      %v985 = vpop.permute.xlu0 %984
      %986 = vrot.lane.b32.xlu0 %v976, 16
      %v987 = vpop.permute.xlu0 %986
      %988 = vrot.lane.b32.xlu0 %v983, 16
      %v989 = vpop.permute.xlu0 %988
      %v990 = vrot.slane %v985, 4
      %v991 = vrot.slane %v987, 4
      %v992 = vrot.slane %v989, 4
      %v993 = vsel %vm414, %v990, %v991
      %vm994 = vcmask 130048
      %v995 = vsel %vm994, %v985, %v993
      %v996 = vsel %vm414, %v991, %v992
      %v997 = vsel %vm994, %v987, %v996
      %1000 = vst [vmem:[#allocation3 + $0x70] sm:$0x33] %v995
      %1001 = vst [vmem:[#allocation3 + $0x78] sm:$0x33] %v997
      %v1002 = vld [vmem:[#allocation2] sm:$0xff]
      %v1003 = vld [vmem:[#allocation2 + $0x8] sm:$0x3]
      %v1006 = vcombine.low %v1002, %v1002
      %v1008 = vunpack.c.l.s4 1983009808
      %v1009 = vunpack.c.0.s8 %v1008
      %v1010 = vlaneseq
      %v1011 = vshrl.u32 %v1010, 7
      %v1012 = vsub.s32 %v1009, %v1011
      %v1013 = vrot.slane %v1006, %v1012
      %v1015 = vunpack.c.l.s4 1983009808
      %v1016 = vunpack.c.0.s8 %v1015
      %v1017 = vlaneseq
      %v1018 = vshrl.u32 %v1017, 7
      %v1019 = vsub.s32 %v1016, %v1018
      %v1020 = vrot.slane %v1002, %v1019
      %v1021 = vcombine.low %v1003, %v1003
      %v1023 = vunpack.c.l.s4 1983009808
      %v1024 = vunpack.c.0.s8 %v1023
      %v1025 = vlaneseq
      %v1026 = vshrl.u32 %v1025, 7
      %v1027 = vsub.s32 %v1024, %v1026
      %v1028 = vrot.slane %v1021, %v1027
      %1029 = vrot.lane.b32.xlu0 %v1013, 8
      %v1030 = vpop.permute.xlu0 %1029
      %1031 = vrot.lane.b32.xlu0 %v1020, 8
      %v1032 = vpop.permute.xlu0 %1031
      %1033 = vrot.lane.b32.xlu0 %v1028, 8
      %v1034 = vpop.permute.xlu0 %1033
      %v1035 = vrot.slane %v1030, 4
      %v1036 = vrot.slane %v1032, 4
      %v1037 = vrot.slane %v1034, 4
      %v1038 = vsel %vm414, %v1035, %v1036
      %vm1039 = vcmask 64512
      %v1040 = vsel %vm1039, %v1030, %v1038
      %v1041 = vsel %vm414, %v1036, %v1037
      %v1042 = vsel %vm1039, %v1032, %v1041
      %1045 = vst [vmem:[#allocation3 + $0x70] sm:$0xcc] %v1040
      %1046 = vst [vmem:[#allocation3 + $0x78] sm:$0xcc] %v1042
      %v1047 = vld [vmem:[#allocation2] sm:$0xff]
      %v1048 = vld [vmem:[#allocation2 + $0x8] sm:$0x3]
      %v1051 = vcombine.high %v1047, %v1047
      %v1053 = vunpack.c.l.s4 1983009808
      %v1054 = vunpack.c.0.s8 %v1053
      %v1055 = vlaneseq
      %v1056 = vshrl.u32 %v1055, 7
      %v1057 = vsub.s32 %v1054, %v1056
      %v1058 = vrot.slane %v1047, %v1057
      %v1060 = vunpack.c.l.s4 1983009808
      %v1061 = vunpack.c.0.s8 %v1060
      %v1062 = vlaneseq
      %v1063 = vshrl.u32 %v1062, 7
      %v1064 = vsub.s32 %v1061, %v1063
      %v1065 = vrot.slane %v1051, %v1064
      %v1067 = vunpack.c.l.s4 1983009808
      %v1068 = vunpack.c.0.s8 %v1067
      %v1069 = vlaneseq
      %v1070 = vshrl.u32 %v1069, 7
      %v1071 = vsub.s32 %v1068, %v1070
      %v1072 = vrot.slane %v1048, %v1071
      %1073 = vrot.lane.b32.xlu0 %v1058, 7
      %v1074 = vpop.permute.xlu0 %1073
      %1075 = vrot.lane.b32.xlu0 %v1065, 7
      %v1076 = vpop.permute.xlu0 %1075
      %1077 = vrot.lane.b32.xlu0 %v1072, 7
      %v1078 = vpop.permute.xlu0 %1077
      %v1079 = vrot.slane %v1074, 4
      %v1080 = vrot.slane %v1076, 4
      %v1081 = vrot.slane %v1078, 4
      %v1082 = vsel %vm414, %v1079, %v1080
      %vm1083 = vcmask 56320
      %v1084 = vsel %vm1083, %v1074, %v1082
      %v1085 = vsel %vm414, %v1080, %v1081
      %v1086 = vsel %vm1083, %v1076, %v1085
      %1089 = vst [vmem:[#allocation3 + $0x80] sm:$0x33] %v1084
      %1090 = vst [vmem:[#allocation3 + $0x88] sm:$0x33] %v1086
      %v1091 = vld [vmem:[#allocation2] sm:$0xff]
      %v1092 = vld [vmem:[#allocation2 + $0x8] sm:$0x3]
      %v1095 = vcombine.low %v1091, %v1091
      %v1097 = vunpack.c.l.s4 1983009808
      %v1098 = vunpack.c.0.s8 %v1097
      %v1099 = vlaneseq
      %v1100 = vshrl.u32 %v1099, 7
      %v1101 = vsub.s32 %v1098, %v1100
      %v1102 = vrot.slane %v1095, %v1101
      %v1104 = vunpack.c.l.s4 1983009808
      %v1105 = vunpack.c.0.s8 %v1104
      %v1106 = vlaneseq
      %v1107 = vshrl.u32 %v1106, 7
      %v1108 = vsub.s32 %v1105, %v1107
      %v1109 = vrot.slane %v1091, %v1108
      %v1110 = vcombine.low %v1092, %v1092
      %v1112 = vunpack.c.l.s4 1983009808
      %v1113 = vunpack.c.0.s8 %v1112
      %v1114 = vlaneseq
      %v1115 = vshrl.u32 %v1114, 7
      %v1116 = vsub.s32 %v1113, %v1115
      %v1117 = vrot.slane %v1110, %v1116
      %1118 = vrot.lane.b32.xlu0 %v1102, 6
      %v1119 = vpop.permute.xlu0 %1118
      %1120 = vrot.lane.b32.xlu0 %v1109, 6
      %v1121 = vpop.permute.xlu0 %1120
      %1122 = vrot.lane.b32.xlu0 %v1117, 6
      %v1123 = vpop.permute.xlu0 %1122
      %v1124 = vrot.slane %v1119, 4
      %v1125 = vrot.slane %v1121, 4
      %v1126 = vrot.slane %v1123, 4
      %v1127 = vsel %vm414, %v1124, %v1125
      %vm1128 = vcmask 48128
      %v1129 = vsel %vm1128, %v1119, %v1127
      %v1130 = vsel %vm414, %v1125, %v1126
      %v1131 = vsel %vm1128, %v1121, %v1130
      %1134 = vst [vmem:[#allocation3 + $0x80] sm:$0xcc] %v1129
      %1135 = vst [vmem:[#allocation3 + $0x88] sm:$0xcc] %v1131
      %v1136 = vld [vmem:[#allocation2 + $0x2] sm:$0xff]
      %v1137 = vld [vmem:[#allocation2 + $0xa] sm:$0x3]
      %v1140 = vcombine.high %v1136, %v1136
      %v1142 = vunpack.c.l.s4 1983009808
      %v1143 = vunpack.c.0.s8 %v1142
      %v1144 = vlaneseq
      %v1145 = vshrl.u32 %v1144, 7
      %v1146 = vsub.s32 %v1143, %v1145
      %v1147 = vrot.slane %v1136, %v1146
      %v1149 = vunpack.c.l.s4 1983009808
      %v1150 = vunpack.c.0.s8 %v1149
      %v1151 = vlaneseq
      %v1152 = vshrl.u32 %v1151, 7
      %v1153 = vsub.s32 %v1150, %v1152
      %v1154 = vrot.slane %v1140, %v1153
      %v1156 = vunpack.c.l.s4 1983009808
      %v1157 = vunpack.c.0.s8 %v1156
      %v1158 = vlaneseq
      %v1159 = vshrl.u32 %v1158, 7
      %v1160 = vsub.s32 %v1157, %v1159
      %v1161 = vrot.slane %v1137, %v1160
      %1162 = vrot.lane.b32.xlu0 %v1147, 56
      %v1163 = vpop.permute.xlu0 %1162
      %1164 = vrot.lane.b32.xlu0 %v1154, 56
      %v1165 = vpop.permute.xlu0 %1164
      %1166 = vrot.lane.b32.xlu0 %v1161, 56
      %v1167 = vpop.permute.xlu0 %1166
      %v1168 = vrot.slane %v1163, 4
      %v1169 = vrot.slane %v1165, 4
      %v1170 = vrot.slane %v1167, 4
      %v1171 = vsel %vm414, %v1168, %v1169
      %vm1172 = vcmask 457728
      %v1173 = vsel %vm1172, %v1163, %v1171
      %v1174 = vsel %vm414, %v1169, %v1170
      %v1175 = vsel %vm1172, %v1165, %v1174
      %1178 = vst [vmem:[#allocation3 + $0x90] sm:$0x33] %v1173
      %1179 = vst [vmem:[#allocation3 + $0x98] sm:$0x33] %v1175
      %v1180 = vld [vmem:[#allocation2 + $0x2] sm:$0xff]
      %v1181 = vld [vmem:[#allocation2 + $0xa] sm:$0x3]
      %v1184 = vcombine.low %v1180, %v1180
      %v1186 = vunpack.c.l.s4 1983009808
      %v1187 = vunpack.c.0.s8 %v1186
      %v1188 = vlaneseq
      %v1189 = vshrl.u32 %v1188, 7
      %v1190 = vsub.s32 %v1187, %v1189
      %v1191 = vrot.slane %v1184, %v1190
      %v1193 = vunpack.c.l.s4 1983009808
      %v1194 = vunpack.c.0.s8 %v1193
      %v1195 = vlaneseq
      %v1196 = vshrl.u32 %v1195, 7
      %v1197 = vsub.s32 %v1194, %v1196
      %v1198 = vrot.slane %v1180, %v1197
      %v1199 = vcombine.low %v1181, %v1181
      %v1201 = vunpack.c.l.s4 1983009808
      %v1202 = vunpack.c.0.s8 %v1201
      %v1203 = vlaneseq
      %v1204 = vshrl.u32 %v1203, 7
      %v1205 = vsub.s32 %v1202, %v1204
      %v1206 = vrot.slane %v1199, %v1205
      %1207 = vrot.lane.b32.xlu0 %v1191, 55
      %v1208 = vpop.permute.xlu0 %1207
      %1209 = vrot.lane.b32.xlu0 %v1198, 55
      %v1210 = vpop.permute.xlu0 %1209
      %1211 = vrot.lane.b32.xlu0 %v1206, 55
      %v1212 = vpop.permute.xlu0 %1211
      %v1213 = vrot.slane %v1208, 4
      %v1214 = vrot.slane %v1210, 4
      %v1215 = vrot.slane %v1212, 4
      %v1216 = vsel %vm414, %v1213, %v1214
      %vm1217 = vcmask 449536
      %v1218 = vsel %vm1217, %v1208, %v1216
      %v1219 = vsel %vm414, %v1214, %v1215
      %v1220 = vsel %vm1217, %v1210, %v1219
      %1223 = vst [vmem:[#allocation3 + $0x90] sm:$0xcc] %v1218
      %1224 = vst [vmem:[#allocation3 + $0x98] sm:$0xcc] %v1220
      %v1225 = vld [vmem:[#allocation2 + $0x2] sm:$0xff]
      %v1226 = vld [vmem:[#allocation2 + $0xa] sm:$0x3]
      %v1229 = vcombine.high %v1225, %v1225
      %v1231 = vunpack.c.l.s4 1983009808
      %v1232 = vunpack.c.0.s8 %v1231
      %v1233 = vlaneseq
      %v1234 = vshrl.u32 %v1233, 7
      %v1235 = vsub.s32 %v1232, %v1234
      %v1236 = vrot.slane %v1225, %v1235
      %v1238 = vunpack.c.l.s4 1983009808
      %v1239 = vunpack.c.0.s8 %v1238
      %v1240 = vlaneseq
      %v1241 = vshrl.u32 %v1240, 7
      %v1242 = vsub.s32 %v1239, %v1241
      %v1243 = vrot.slane %v1229, %v1242
      %v1245 = vunpack.c.l.s4 1983009808
      %v1246 = vunpack.c.0.s8 %v1245
      %v1247 = vlaneseq
      %v1248 = vshrl.u32 %v1247, 7
      %v1249 = vsub.s32 %v1246, %v1248
      %v1250 = vrot.slane %v1226, %v1249
      %1251 = vrot.lane.b32.xlu0 %v1236, 54
      %v1252 = vpop.permute.xlu0 %1251
      %1253 = vrot.lane.b32.xlu0 %v1243, 54
      %v1254 = vpop.permute.xlu0 %1253
      %1255 = vrot.lane.b32.xlu0 %v1250, 54
      %v1256 = vpop.permute.xlu0 %1255
      %v1257 = vrot.slane %v1252, 4
      %v1258 = vrot.slane %v1254, 4
      %v1259 = vrot.slane %v1256, 4
      %v1260 = vsel %vm414, %v1257, %v1258
      %vm1261 = vcmask 441344
      %v1262 = vsel %vm1261, %v1252, %v1260
      %v1263 = vsel %vm414, %v1258, %v1259
      %v1264 = vsel %vm1261, %v1254, %v1263
      %1267 = vst [vmem:[#allocation3 + $0xa0] sm:$0x33] %v1262
      %1268 = vst [vmem:[#allocation3 + $0xa8] sm:$0x33] %v1264
      %v1269 = vld [vmem:[#allocation2 + $0x2] sm:$0xff]
      %v1270 = vld [vmem:[#allocation2 + $0xa] sm:$0x3]
      %v1273 = vcombine.low %v1269, %v1269
      %v1275 = vunpack.c.l.s4 1983009808
      %v1276 = vunpack.c.0.s8 %v1275
      %v1277 = vlaneseq
      %v1278 = vshrl.u32 %v1277, 7
      %v1279 = vsub.s32 %v1276, %v1278
      %v1280 = vrot.slane %v1273, %v1279
      %v1282 = vunpack.c.l.s4 1983009808
      %v1283 = vunpack.c.0.s8 %v1282
      %v1284 = vlaneseq
      %v1285 = vshrl.u32 %v1284, 7
      %v1286 = vsub.s32 %v1283, %v1285
      %v1287 = vrot.slane %v1269, %v1286
      %v1288 = vcombine.low %v1270, %v1270
      %v1290 = vunpack.c.l.s4 1983009808
      %v1291 = vunpack.c.0.s8 %v1290
      %v1292 = vlaneseq
      %v1293 = vshrl.u32 %v1292, 7
      %v1294 = vsub.s32 %v1291, %v1293
      %v1295 = vrot.slane %v1288, %v1294
      %1296 = vrot.lane.b32.xlu0 %v1280, 46
      %v1297 = vpop.permute.xlu0 %1296
      %1298 = vrot.lane.b32.xlu0 %v1287, 46
      %v1299 = vpop.permute.xlu0 %1298
      %1300 = vrot.lane.b32.xlu0 %v1295, 46
      %v1301 = vpop.permute.xlu0 %1300
      %v1302 = vrot.slane %v1297, 4
      %v1303 = vrot.slane %v1299, 4
      %v1304 = vrot.slane %v1301, 4
      %v1305 = vsel %vm414, %v1302, %v1303
      %vm1306 = vcmask 375808
      %v1307 = vsel %vm1306, %v1297, %v1305
      %v1308 = vsel %vm414, %v1303, %v1304
      %v1309 = vsel %vm1306, %v1299, %v1308
      %1312 = vst [vmem:[#allocation3 + $0xa0] sm:$0xcc] %v1307
      %1313 = vst [vmem:[#allocation3 + $0xa8] sm:$0xcc] %v1309
      %v1314 = vld [vmem:[#allocation2 + $0x2] sm:$0xff]
      %v1315 = vld [vmem:[#allocation2 + $0xa] sm:$0x3]
      %v1318 = vcombine.high %v1314, %v1314
      %v1320 = vunpack.c.l.s4 1983009808
      %v1321 = vunpack.c.0.s8 %v1320
      %v1322 = vlaneseq
      %v1323 = vshrl.u32 %v1322, 7
      %v1324 = vsub.s32 %v1321, %v1323
      %v1325 = vrot.slane %v1314, %v1324
      %v1327 = vunpack.c.l.s4 1983009808
      %v1328 = vunpack.c.0.s8 %v1327
      %v1329 = vlaneseq
      %v1330 = vshrl.u32 %v1329, 7
      %v1331 = vsub.s32 %v1328, %v1330
      %v1332 = vrot.slane %v1318, %v1331
      %v1334 = vunpack.c.l.s4 1983009808
      %v1335 = vunpack.c.0.s8 %v1334
      %v1336 = vlaneseq
      %v1337 = vshrl.u32 %v1336, 7
      %v1338 = vsub.s32 %v1335, %v1337
      %v1339 = vrot.slane %v1315, %v1338
      %1340 = vrot.lane.b32.xlu0 %v1325, 45
      %v1341 = vpop.permute.xlu0 %1340
      %1342 = vrot.lane.b32.xlu0 %v1332, 45
      %v1343 = vpop.permute.xlu0 %1342
      %1344 = vrot.lane.b32.xlu0 %v1339, 45
      %v1345 = vpop.permute.xlu0 %1344
      %v1346 = vrot.slane %v1341, 4
      %v1347 = vrot.slane %v1343, 4
      %v1348 = vrot.slane %v1345, 4
      %v1349 = vsel %vm414, %v1346, %v1347
      %vm1350 = vcmask 367616
      %v1351 = vsel %vm1350, %v1341, %v1349
      %v1352 = vsel %vm414, %v1347, %v1348
      %v1353 = vsel %vm1350, %v1343, %v1352
      %1356 = vst [vmem:[#allocation3 + $0xb0] sm:$0x33] %v1351
      %1357 = vst [vmem:[#allocation3 + $0xb8] sm:$0x33] %v1353
      %v1358 = vld [vmem:[#allocation2 + $0x2] sm:$0xff]
      %v1359 = vld [vmem:[#allocation2 + $0xa] sm:$0x3]
      %v1362 = vcombine.low %v1358, %v1358
      %v1364 = vunpack.c.l.s4 1983009808
      %v1365 = vunpack.c.0.s8 %v1364
      %v1366 = vlaneseq
      %v1367 = vshrl.u32 %v1366, 7
      %v1368 = vsub.s32 %v1365, %v1367
      %v1369 = vrot.slane %v1362, %v1368
      %v1371 = vunpack.c.l.s4 1983009808
      %v1372 = vunpack.c.0.s8 %v1371
      %v1373 = vlaneseq
      %v1374 = vshrl.u32 %v1373, 7
      %v1375 = vsub.s32 %v1372, %v1374
      %v1376 = vrot.slane %v1358, %v1375
      %v1377 = vcombine.low %v1359, %v1359
      %v1379 = vunpack.c.l.s4 1983009808
      %v1380 = vunpack.c.0.s8 %v1379
      %v1381 = vlaneseq
      %v1382 = vshrl.u32 %v1381, 7
      %v1383 = vsub.s32 %v1380, %v1382
      %v1384 = vrot.slane %v1377, %v1383
      %1385 = vrot.lane.b32.xlu0 %v1369, 44
      %v1386 = vpop.permute.xlu0 %1385
      %1387 = vrot.lane.b32.xlu0 %v1376, 44
      %v1388 = vpop.permute.xlu0 %1387
      %1389 = vrot.lane.b32.xlu0 %v1384, 44
      %v1390 = vpop.permute.xlu0 %1389
      %v1391 = vrot.slane %v1386, 4
      %v1392 = vrot.slane %v1388, 4
      %v1393 = vrot.slane %v1390, 4
      %v1394 = vsel %vm414, %v1391, %v1392
      %vm1395 = vcmask 359424
      %v1396 = vsel %vm1395, %v1386, %v1394
      %v1397 = vsel %vm414, %v1392, %v1393
      %v1398 = vsel %vm1395, %v1388, %v1397
      %1401 = vst [vmem:[#allocation3 + $0xb0] sm:$0xcc] %v1396
      %1402 = vst [vmem:[#allocation3 + $0xb8] sm:$0xcc] %v1398
      %v1403 = vld [vmem:[#allocation2 + $0x2] sm:$0xff]
      %v1404 = vld [vmem:[#allocation2 + $0xa] sm:$0x3]
      %v1407 = vcombine.high %v1403, %v1403
      %v1409 = vunpack.c.l.s4 1983009808
      %v1410 = vunpack.c.0.s8 %v1409
      %v1411 = vlaneseq
      %v1412 = vshrl.u32 %v1411, 7
      %v1413 = vsub.s32 %v1410, %v1412
      %v1414 = vrot.slane %v1403, %v1413
      %v1416 = vunpack.c.l.s4 1983009808
      %v1417 = vunpack.c.0.s8 %v1416
      %v1418 = vlaneseq
      %v1419 = vshrl.u32 %v1418, 7
      %v1420 = vsub.s32 %v1417, %v1419
      %v1421 = vrot.slane %v1407, %v1420
      %v1423 = vunpack.c.l.s4 1983009808
      %v1424 = vunpack.c.0.s8 %v1423
      %v1425 = vlaneseq
      %v1426 = vshrl.u32 %v1425, 7
      %v1427 = vsub.s32 %v1424, %v1426
      %v1428 = vrot.slane %v1404, %v1427
      %1429 = vrot.lane.b32.xlu0 %v1414, 36
      %v1430 = vpop.permute.xlu0 %1429
      %1431 = vrot.lane.b32.xlu0 %v1421, 36
      %v1432 = vpop.permute.xlu0 %1431
      %1433 = vrot.lane.b32.xlu0 %v1428, 36
      %v1434 = vpop.permute.xlu0 %1433
      %v1435 = vrot.slane %v1430, 4
      %v1436 = vrot.slane %v1432, 4
      %v1437 = vrot.slane %v1434, 4
      %v1438 = vsel %vm414, %v1435, %v1436
      %vm1439 = vcmask 293888
      %v1440 = vsel %vm1439, %v1430, %v1438
      %v1441 = vsel %vm414, %v1436, %v1437
      %v1442 = vsel %vm1439, %v1432, %v1441
      %1445 = vst [vmem:[#allocation3 + $0xc0] sm:$0x33] %v1440
      %1446 = vst [vmem:[#allocation3 + $0xc8] sm:$0x33] %v1442
      %v1447 = vld [vmem:[#allocation2 + $0x2] sm:$0xff]
      %v1448 = vld [vmem:[#allocation2 + $0xa] sm:$0x3]
      %v1451 = vcombine.low %v1447, %v1447
      %v1453 = vunpack.c.l.s4 1983009808
      %v1454 = vunpack.c.0.s8 %v1453
      %v1455 = vlaneseq
      %v1456 = vshrl.u32 %v1455, 7
      %v1457 = vsub.s32 %v1454, %v1456
      %v1458 = vrot.slane %v1451, %v1457
      %v1460 = vunpack.c.l.s4 1983009808
      %v1461 = vunpack.c.0.s8 %v1460
      %v1462 = vlaneseq
      %v1463 = vshrl.u32 %v1462, 7
      %v1464 = vsub.s32 %v1461, %v1463
      %v1465 = vrot.slane %v1447, %v1464
      %v1466 = vcombine.low %v1448, %v1448
      %v1468 = vunpack.c.l.s4 1983009808
      %v1469 = vunpack.c.0.s8 %v1468
      %v1470 = vlaneseq
      %v1471 = vshrl.u32 %v1470, 7
      %v1472 = vsub.s32 %v1469, %v1471
      %v1473 = vrot.slane %v1466, %v1472
      %1474 = vrot.lane.b32.xlu0 %v1458, 35
      %v1475 = vpop.permute.xlu0 %1474
      %1476 = vrot.lane.b32.xlu0 %v1465, 35
      %v1477 = vpop.permute.xlu0 %1476
      %1478 = vrot.lane.b32.xlu0 %v1473, 35
      %v1479 = vpop.permute.xlu0 %1478
      %v1480 = vrot.slane %v1475, 4
      %v1481 = vrot.slane %v1477, 4
      %v1482 = vrot.slane %v1479, 4
      %v1483 = vsel %vm414, %v1480, %v1481
      %vm1484 = vcmask 285696
      %v1485 = vsel %vm1484, %v1475, %v1483
      %v1486 = vsel %vm414, %v1481, %v1482
      %v1487 = vsel %vm1484, %v1477, %v1486
      %1490 = vst [vmem:[#allocation3 + $0xc0] sm:$0xcc] %v1485
      %1491 = vst [vmem:[#allocation3 + $0xc8] sm:$0xcc] %v1487
      %v1492 = vld [vmem:[#allocation2 + $0x2] sm:$0xff]
      %v1493 = vld [vmem:[#allocation2 + $0xa] sm:$0x3]
      %v1496 = vcombine.high %v1492, %v1492
      %v1498 = vunpack.c.l.s4 1983009808
      %v1499 = vunpack.c.0.s8 %v1498
      %v1500 = vlaneseq
      %v1501 = vshrl.u32 %v1500, 7
      %v1502 = vsub.s32 %v1499, %v1501
      %v1503 = vrot.slane %v1492, %v1502
      %v1505 = vunpack.c.l.s4 1983009808
      %v1506 = vunpack.c.0.s8 %v1505
      %v1507 = vlaneseq
      %v1508 = vshrl.u32 %v1507, 7
      %v1509 = vsub.s32 %v1506, %v1508
      %v1510 = vrot.slane %v1496, %v1509
      %v1512 = vunpack.c.l.s4 1983009808
      %v1513 = vunpack.c.0.s8 %v1512
      %v1514 = vlaneseq
      %v1515 = vshrl.u32 %v1514, 7
      %v1516 = vsub.s32 %v1513, %v1515
      %v1517 = vrot.slane %v1493, %v1516
      %1518 = vrot.lane.b32.xlu0 %v1503, 34
      %v1519 = vpop.permute.xlu0 %1518
      %1520 = vrot.lane.b32.xlu0 %v1510, 34
      %v1521 = vpop.permute.xlu0 %1520
      %1522 = vrot.lane.b32.xlu0 %v1517, 34
      %v1523 = vpop.permute.xlu0 %1522
      %v1524 = vrot.slane %v1519, 4
      %v1525 = vrot.slane %v1521, 4
      %v1526 = vrot.slane %v1523, 4
      %v1527 = vsel %vm414, %v1524, %v1525
      %vm1528 = vcmask 277504
      %v1529 = vsel %vm1528, %v1519, %v1527
      %v1530 = vsel %vm414, %v1525, %v1526
      %v1531 = vsel %vm1528, %v1521, %v1530
      %1534 = vst [vmem:[#allocation3 + $0xd0] sm:$0x33] %v1529
      %1535 = vst [vmem:[#allocation3 + $0xd8] sm:$0x33] %v1531
      %v1536 = vld [vmem:[%s2] sm:$0xf]
      %v1537 = vld [vmem:[#allocation3] sm:$0xff]
      %v1538 = vld [vmem:[#allocation3 + $0x8] sm:$0xff]
      %v1539 = vld [vmem:[#allocation3 + $0x10] sm:$0xff]
      %v1540 = vld [vmem:[#allocation3 + $0x18] sm:$0xff]
      %v1541 = vld [vmem:[#allocation3 + $0x20] sm:$0xff]
      %v1542 = vld [vmem:[#allocation3 + $0x28] sm:$0xff]
      %v1543 = vld [vmem:[#allocation3 + $0x30] sm:$0xff]
      %v1544 = vld [vmem:[#allocation3 + $0x38] sm:$0xff]
      %v1545 = vld [vmem:[#allocation3 + $0x40] sm:$0xff]
      %v1546 = vld [vmem:[#allocation3 + $0x48] sm:$0xff]
      %v1547 = vld [vmem:[#allocation3 + $0x50] sm:$0xff]
      %v1548 = vld [vmem:[#allocation3 + $0x58] sm:$0xff]
      %v1549 = vld [vmem:[#allocation3 + $0x60] sm:$0xff]
      %v1550 = vld [vmem:[#allocation3 + $0x68] sm:$0xff]
      %v1551 = vld [vmem:[#allocation3 + $0x70] sm:$0xff]
      %v1552 = vld [vmem:[#allocation3 + $0x78] sm:$0xff]
      %v1553 = vld [vmem:[#allocation3 + $0x80] sm:$0xff]
      %v1554 = vld [vmem:[#allocation3 + $0x88] sm:$0xff]
      %v1555 = vld [vmem:[#allocation3 + $0x90] sm:$0xff]
      %v1556 = vld [vmem:[#allocation3 + $0x98] sm:$0xff]
      %v1557 = vld [vmem:[#allocation3 + $0xa0] sm:$0xff]
      %v1558 = vld [vmem:[#allocation3 + $0xa8] sm:$0xff]
      %v1559 = vld [vmem:[#allocation3 + $0xb0] sm:$0xff]
      %v1560 = vld [vmem:[#allocation3 + $0xb8] sm:$0xff]
      %v1561 = vld [vmem:[#allocation3 + $0xc0] sm:$0xff]
      %v1562 = vld [vmem:[#allocation3 + $0xc8] sm:$0xff]
      %v1563 = vld [vmem:[#allocation3 + $0xd0] sm:$0x33]
      %v1564 = vld [vmem:[#allocation3 + $0xd8] sm:$0x33]
      %v1593 = vunpack.c.l.b16 %v1537
      %v1594 = vunpack.c.h.b16 %v1537
      %v1595 = vunpack.c.l.b16 %v1538
      %v1596 = vunpack.c.h.b16 %v1538
      %v1597 = vunpack.c.l.b16 %v1539
      %v1598 = vunpack.c.h.b16 %v1539
      %v1599 = vunpack.c.l.b16 %v1540
      %v1600 = vunpack.c.h.b16 %v1540
      %v1601 = vunpack.c.l.b16 %v1541
      %v1602 = vunpack.c.h.b16 %v1541
      %v1603 = vunpack.c.l.b16 %v1542
      %v1604 = vunpack.c.h.b16 %v1542
      %v1605 = vunpack.c.l.b16 %v1543
      %v1606 = vunpack.c.h.b16 %v1543
      %v1607 = vunpack.c.l.b16 %v1544
      %v1608 = vunpack.c.h.b16 %v1544
      %v1609 = vunpack.c.l.b16 %v1545
      %v1610 = vunpack.c.h.b16 %v1545
      %v1611 = vunpack.c.l.b16 %v1546
      %v1612 = vunpack.c.h.b16 %v1546
      %v1613 = vunpack.c.l.b16 %v1547
      %v1614 = vunpack.c.h.b16 %v1547
      %v1615 = vunpack.c.l.b16 %v1548
      %v1616 = vunpack.c.h.b16 %v1548
      %v1617 = vunpack.c.l.b16 %v1549
      %v1618 = vunpack.c.h.b16 %v1549
      %v1619 = vunpack.c.l.b16 %v1550
      %v1620 = vunpack.c.h.b16 %v1550
      %v1621 = vunpack.c.l.b16 %v1551
      %v1622 = vunpack.c.h.b16 %v1551
      %v1623 = vunpack.c.l.b16 %v1552
      %v1624 = vunpack.c.h.b16 %v1552
      %v1625 = vunpack.c.l.b16 %v1553
      %v1626 = vunpack.c.h.b16 %v1553
      %v1627 = vunpack.c.l.b16 %v1554
      %v1628 = vunpack.c.h.b16 %v1554
      %v1629 = vunpack.c.l.b16 %v1555
      %v1630 = vunpack.c.h.b16 %v1555
      %v1631 = vunpack.c.l.b16 %v1556
      %v1632 = vunpack.c.h.b16 %v1556
      %v1633 = vunpack.c.l.b16 %v1557
      %v1634 = vunpack.c.h.b16 %v1557
      %v1635 = vunpack.c.l.b16 %v1558
      %v1636 = vunpack.c.h.b16 %v1558
      %v1637 = vunpack.c.l.b16 %v1559
      %v1638 = vunpack.c.h.b16 %v1559
      %v1639 = vunpack.c.l.b16 %v1560
      %v1640 = vunpack.c.h.b16 %v1560
      %v1641 = vunpack.c.l.b16 %v1561
      %v1642 = vunpack.c.h.b16 %v1561
      %v1643 = vunpack.c.l.b16 %v1562
      %v1644 = vunpack.c.h.b16 %v1562
      %v1645 = vunpack.c.l.b16 %v1563
      %v1646 = vunpack.c.h.b16 %v1563
      %v1647 = vunpack.c.l.b16 %v1564
      %v1648 = vunpack.c.h.b16 %v1564
      %v1649 = vpack.c.b16 %v1597, %v1593
      %v1650 = vpack.c.b16 %v1598, %v1594
      %v1651 = vpack.c.b16 %v1599, %v1595
      %v1652 = vpack.c.b16 %v1600, %v1596
      %v1653 = vpack.c.b16 %v1605, %v1601
      %v1654 = vpack.c.b16 %v1606, %v1602
      %v1655 = vpack.c.b16 %v1607, %v1603
      %v1656 = vpack.c.b16 %v1608, %v1604
      %v1657 = vpack.c.b16 %v1613, %v1609
      %v1658 = vpack.c.b16 %v1614, %v1610
      %v1659 = vpack.c.b16 %v1615, %v1611
      %v1660 = vpack.c.b16 %v1616, %v1612
      %v1661 = vpack.c.b16 %v1621, %v1617
      %v1662 = vpack.c.b16 %v1622, %v1618
      %v1663 = vpack.c.b16 %v1623, %v1619
      %v1664 = vpack.c.b16 %v1624, %v1620
      %v1665 = vpack.c.b16 %v1629, %v1625
      %v1666 = vpack.c.b16 %v1630, %v1626
      %v1667 = vpack.c.b16 %v1631, %v1627
      %v1668 = vpack.c.b16 %v1632, %v1628
      %v1669 = vpack.c.b16 %v1637, %v1633
      %v1670 = vpack.c.b16 %v1638, %v1634
      %v1671 = vpack.c.b16 %v1639, %v1635
      %v1672 = vpack.c.b16 %v1640, %v1636
      %v1673 = vpack.c.b16 %v1645, %v1641
      %v1674 = vpack.c.b16 %v1646, %v1642
      %v1675 = vpack.c.b16 %v1647, %v1643
      %v1676 = vpack.c.b16 %v1648, %v1644
      %vm1701 = vcmask 883712
      %v1703 = vsel %vm1701, %v1536, 0
      %vm1705 = vcmask 1045504
      %v1707 = vsel %vm1705, %v1673, 0
      %v1710 = vsel %vm1705, %v1674, 0
      %v1713 = vsel %vm1705, %v1675, 0
      %v1716 = vsel %vm1705, %v1676, 0
      %1718 = vmatprep.subr.bf16.mxu0 %v1650
      %1719 = vmatpush1.bf16.msra.mxu0 %v1649
      %1720 = vmatprep.subr.bf16.mxu0 %v1654
      %1721 = vmatpush1.bf16.msra.mxu0 %v1653
      %1722 = vmatprep.subr.bf16.mxu0 %v1658
      %1723 = vmatpush1.bf16.msra.mxu0 %v1657
      %1724 = vmatprep.subr.bf16.mxu0 %v1662
      %1725 = vmatpush1.bf16.msra.mxu0 %v1661
      %1726 = vmatprep.subr.bf16.mxu0 %v1666
      %1727 = vmatpush1.bf16.msra.mxu0 %v1665
      %1728 = vmatprep.subr.bf16.mxu0 %v1670
      %1729 = vmatpush1.bf16.msra.mxu0 %v1669
      %1730 = vmatprep.subr.bf16.mxu0 %v1710
      %1731 = vmatpush1.bf16.msra.mxu0 %v1707
      %1732 = vmatprep.subr.bf16.mxu0 0
      %1733 = vmatpush1.bf16.msra.mxu0 0
      %1734 = vmatprep.subr.bf16.mxu0 0
      %1735 = vmatpush1.bf16.msra.mxu0 0
      %1736 = vmatprep.subr.bf16.mxu0 0
      %1737 = vmatpush1.bf16.msra.mxu0 0
      %1738 = vmatprep.subr.bf16.mxu0 0
      %1739 = vmatpush1.bf16.msra.mxu0 0
      %1740 = vmatprep.subr.bf16.mxu0 0
      %1741 = vmatpush1.bf16.msra.mxu0 0
      %1742 = vmatprep.subr.bf16.mxu0 0
      %1743 = vmatpush1.bf16.msra.mxu0 0
      %1744 = vmatprep.subr.bf16.mxu0 0
      %1745 = vmatpush1.bf16.msra.mxu0 0
      %1746 = vmatprep.subr.bf16.mxu0 0
      %1747 = vmatpush1.bf16.msra.mxu0 0
      %1748 = vmatprep.subr.bf16.mxu0 0
      %1749 = vmatpush1.bf16.msra.mxu0 0
      %1750 = vmatprep.mubr.bf16.mxu0 0
      %1751 = vmatmul.mubr.bf16.gmra.mrb[0].mxu0 %v1703
      %v1752 = vpop.f32.mrb[0].mxu0
      %v1753 = vadd.f32 0.0, %v1752
      %v1754 = vpop.f32.mrb[0].mxu0
      %v1755 = vadd.f32 0.0, %v1754
      %v1756 = vpop.f32.mrb[0].mxu0
      %v1757 = vpop.f32.mrb[0].mxu0
      %1758 = vdwg.mxu0
      %1759 = vmatprep.subr.bf16.mxu0 %v1652
      %1760 = vmatpush1.bf16.msra.mxu0 %v1651
      %1761 = vmatprep.subr.bf16.mxu0 %v1656
      %1762 = vmatpush1.bf16.msra.mxu0 %v1655
      %1763 = vmatprep.subr.bf16.mxu0 %v1660
      %1764 = vmatpush1.bf16.msra.mxu0 %v1659
      %1765 = vmatprep.subr.bf16.mxu0 %v1664
      %1766 = vmatpush1.bf16.msra.mxu0 %v1663
      %1767 = vmatprep.subr.bf16.mxu0 %v1668
      %1768 = vmatpush1.bf16.msra.mxu0 %v1667
      %1769 = vmatprep.subr.bf16.mxu0 %v1672
      %1770 = vmatpush1.bf16.msra.mxu0 %v1671
      %1771 = vmatprep.subr.bf16.mxu0 %v1716
      %1772 = vmatpush1.bf16.msra.mxu0 %v1713
      %1773 = vmatprep.subr.bf16.mxu0 0
      %1774 = vmatpush1.bf16.msra.mxu0 0
      %1775 = vmatprep.subr.bf16.mxu0 0
      %1776 = vmatpush1.bf16.msra.mxu0 0
      %1777 = vmatprep.subr.bf16.mxu0 0
      %1778 = vmatpush1.bf16.msra.mxu0 0
      %1779 = vmatprep.subr.bf16.mxu0 0
      %1780 = vmatpush1.bf16.msra.mxu0 0
      %1781 = vmatprep.subr.bf16.mxu0 0
      %1782 = vmatpush1.bf16.msra.mxu0 0
      %1783 = vmatprep.subr.bf16.mxu0 0
      %1784 = vmatpush1.bf16.msra.mxu0 0
      %1785 = vmatprep.subr.bf16.mxu0 0
      %1786 = vmatpush1.bf16.msra.mxu0 0
      %1787 = vmatprep.subr.bf16.mxu0 0
      %1788 = vmatpush1.bf16.msra.mxu0 0
      %1789 = vmatprep.subr.bf16.mxu0 0
      %1790 = vmatpush1.bf16.msra.mxu0 0
      %1791 = vmatprep.mubr.bf16.mxu0 0
      %1792 = vmatmul.mubr.bf16.gmra.mrb[0].mxu0 %v1703
      %v1793 = vpop.f32.mrb[0].mxu0
      %v1794 = vadd.f32 0.0, %v1793
      %v1795 = vpop.f32.mrb[0].mxu0
      %v1796 = vadd.f32 0.0, %v1795
      %v1797 = vpop.f32.mrb[0].mxu0
      %v1798 = vpop.f32.mrb[0].mxu0
      %1799 = vdwg.mxu0
      %p1800 = scmp.eq.s32.totalorder %s22, 0
      // Predicated region
      $region41: #{single_conv_forward.1} parent=39 // pred_check
        %p1801 = pneg %p1800
      $region42: #{single_conv_forward.1} parent=39 // pred_check_branch
        %1803 = sbr.rel (%p1801) target = $region44
      $region43: #{single_conv_forward.1} parent=39 // pred_region
        %p1804 = scmp.eq.s32.totalorder %s23, 0
        // Predicated region
        $region45: #{single_conv_forward.1} parent=43 // pred_check
          %p1805 = pneg %p1804
        $region46: #{single_conv_forward.1} parent=43 // pred_check_branch
          %1807 = sbr.rel (%p1805) target = $region48
        $region47: #{single_conv_forward.1} parent=43 // pred_region
          %vm1808 = vcmask 7168
          %1809 = vst.msk [vmem:[#allocation4] sm:$0xff] %vm1808, 0.0
          %1810 = vst.msk [vmem:[#allocation4 + $0x8] sm:$0xff] %vm1808, 0.0
        $region48: #{single_conv_forward.1} parent=43 // pred_fallthru
          _
        %v1811 = vld [vmem:[%s338] sm:$0xf]
        %v1813 = vlaneseq
        %v1814 = vshrl.u32 %v1813, 7
        %v1815 = vsub.s32 0, %v1814
        %v1816 = vrot.slane %v1811, %v1815
        %v1817 = vlaneseq
        %v1818 = vshrl.u32 %v1817, 7
        %v1819 = vsub.s32 1, %v1818
        %v1820 = vrot.slane %v1811, %v1819
        %v1821 = vlaneseq
        %v1822 = vshrl.u32 %v1821, 7
        %v1823 = vsub.s32 2, %v1822
        %v1824 = vrot.slane %v1811, %v1823
        %v1825 = vlaneseq
        %v1826 = vshrl.u32 %v1825, 7
        %v1827 = vsub.s32 3, %v1826
        %v1828 = vrot.slane %v1811, %v1827
        %v1833 = vmul.f32 %v1753, %v1816
        %v1834 = vmul.f32 %v1755, %v1820
        %v1835 = vmul.f32 %v1794, %v1824
        %v1836 = vmul.f32 %v1796, %v1828
        %v1837 = vld [vmem:[#allocation4] sm:$0xff]
        %v1838 = vadd.f32 %v1833, %v1834
        %v1839 = vadd.f32 %v1838, %v1835
        %v1840 = vadd.f32 %v1839, %v1836
        %1841 = vadd.xlane.f32.xlu0 %v1840
        %v1842 = vpop.xlane.xlu0 %1841
        %v1843 = vadd.f32 %v1837, %v1842
        %vm1844 = vcmask 7168
        %1845 = vst.msk [vmem:[#allocation4] sm:$0xff] %vm1844, %v1843
        %s1846 = scalar_lea.vmem [#allocation4], 8
        %v1847 = vld [vmem:[%s1846] sm:$0xff]
        %v1848 = vmul.f32 %v1833, %v1753
        %v1849 = vmul.f32 %v1834, %v1755
        %v1850 = vmul.f32 %v1835, %v1794
        %v1851 = vmul.f32 %v1836, %v1796
        %v1852 = vadd.f32 %v1848, %v1849
        %v1853 = vadd.f32 %v1852, %v1850
        %v1854 = vadd.f32 %v1853, %v1851
        %1855 = vadd.xlane.f32.xlu0 %v1854
        %v1856 = vpop.xlane.xlu0 %1855
        %v1857 = vadd.f32 %v1847, %v1856
        %1858 = vst.msk [vmem:[%s1846] sm:$0xff] %vm1844, %v1857
        %p1859 = scmp.eq.s32.totalorder %s23, 1
        // Predicated region
        $region49: #{single_conv_forward.1} parent=43 // pred_check
          %p1860 = pneg %p1859
        $region50: #{single_conv_forward.1} parent=43 // pred_check_branch
          %1862 = sbr.rel (%p1860) target = $region52
        $region51: #{single_conv_forward.1} parent=43 // pred_region
          %v1863 = vld [vmem:[#allocation4] sm:$0xff]
          %v1864 = vmul.f32 %v1863, 0.001953125
          %v1865 = vld [vmem:[%s1846] sm:$0xff]
          %v1866 = vmul.f32 %v1865, 0.001953125
          %v1867 = vmul.f32 %v1864, %v1864
          %v1868 = vsub.f32 %v1866, %v1867
          %v1869 = vmax.f32 %v1868, 0.0
          %v1870 = vld [vmem:[%s3] sm:$0xff]
          %v1871 = vadd.f32 %v1869, 1e-05
          %v1872 = vrsqrt.pop %v1871
          %v1873 = vmul.f32 %v1870, %v1872
          %1874 = vst.msk [vmem:[#allocation4] sm:$0xff] %vm1844, %v1873
          %s1875 = scalar_lea.vmem %s3, 8
          %v1876 = vld [vmem:[%s1875] sm:$0xff]
          %v1877 = vmul.f32 %v1864, %v1873
          %v1878 = vsub.f32 %v1876, %v1877
          %1879 = vst.msk [vmem:[%s1846] sm:$0xff] %vm1844, %v1878
        $region52: #{single_conv_forward.1} parent=43 // pred_fallthru
          _
      $region44: #{single_conv_forward.1} parent=39 // pred_fallthru
        _
      %p1880 = scmp.eq.s32.totalorder %s22, 1
      // Predicated region
      $region53: #{single_conv_forward.1} parent=39 // pred_check
        %p1881 = pneg %p1880
      $region54: #{single_conv_forward.1} parent=39 // pred_check_branch
        %1883 = sbr.rel (%p1881) target = $region56
      $region55: #{single_conv_forward.1} parent=39 // pred_region
        %v1884 = vld [vmem:[#allocation4] sm:$0xff]
        %1886 = vset.pattern.permute.xlu0 0
        %1887 = vperm.xlu0 %1886, %v1884
        %v1888 = vpop.permute.xlu0 %1887
        %v1890 = vmul.f32 %v1753, %v1888
        %v1891 = vmul.f32 %v1755, %v1888
        %v1892 = vmul.f32 %v1794, %v1888
        %v1893 = vmul.f32 %v1796, %v1888
        %s1894 = scalar_lea.vmem [#allocation4], 8
        %v1895 = vld [vmem:[%s1894] sm:$0xff]
        %1897 = vset.pattern.permute.xlu0 0
        %1898 = vperm.xlu0 %1897, %v1895
        %v1899 = vpop.permute.xlu0 %1898
        %v1901 = vadd.f32 %v1890, %v1899
        %v1902 = vadd.f32 %v1891, %v1899
        %v1903 = vadd.f32 %v1892, %v1899
        %v1904 = vadd.f32 %v1893, %v1899
        %v1905 = vmax.f32 %v1901, 0.0
        %v1906 = vmax.f32 %v1902, 0.0
        %v1907 = vmax.f32 %v1903, 0.0
        %v1908 = vmax.f32 %v1904, 0.0
        %1909 = vst [vmem:[%s349] sm:$0xff] %v1905
        %1910 = vst [vmem:[%s349 + $0x8] sm:$0xff] %v1906
        %1911 = vst [vmem:[%s349 + $0x10] sm:$0xff] %v1907
        %1912 = vst [vmem:[%s349 + $0x18] sm:$0xff] %v1908
      $region56: #{single_conv_forward.1} parent=39 // pred_fallthru
        _
      %s1913 = smul.u32 %s23, %s22
      %s1914 = smul.u32 4, %s1913
      %p1915 = scmp.lt.s32.totalorder %s21, 1
      %s1916 = scalar_select %p1915, %s21, 1
      %p1917 = scmp.lt.s32.totalorder %s1914, 7
      %s1918 = scalar_select %p1917, %s1914, 7
      %s1919 = smul.addr %s1916, 8
      %s1920 = sadd.s32 %s1918, %s1919
      %s1921 = smul.addr %s1920, 8
      %s1922 = scalar_lea.vmem %s5, %s1921
      // Predicated region
      $region57: #{single_conv_forward.1} parent=39 // pred_check
        %p1923 = pneg %p187
      $region58: #{single_conv_forward.1} parent=39 // pred_check_branch
        %1925 = sbr.rel (%p1923) target = $region60
      $region59: #{single_conv_forward.1} parent=39 // pred_region
        %s1926 = smul.u32 %s23, %s22
        %s1927 = smul.u32 4, %s1926
      $region60: #{single_conv_forward.1} parent=39 // pred_fallthru
        _
    $region40: #{single_conv_forward.1} parent=5 // pred_fallthru
      _
    %p1928 = scmp.le.s32.totalorder 2, %s11
    // Predicated region
    $region61: #{single_conv_forward.1} parent=5 // pred_check
      %p1929 = pneg %p1928
    $region62: #{single_conv_forward.1} parent=5 // pred_check_branch
      %1931 = sbr.rel (%p1929) target = $region64
    $region63: #{single_conv_forward.1} parent=5 // pred_region
      %s1932 = ssub.s32 %s11, 2
      // Predicated region
      $region65: #{single_conv_forward.1} parent=63 // pred_check
        %p1933 = pneg %p193
      $region66: #{single_conv_forward.1} parent=63 // pred_check_branch
        %1935 = sbr.rel (%p1933) target = $region68
      $region67: #{single_conv_forward.1} parent=63 // pred_region
        %s1936 = smul.u32 %s26, %s25
        %s1937 = smul.u32 4, %s1936
        %p1938 = scmp.lt.s32.totalorder %s24, 1
        %s1939 = scalar_select %p1938, %s24, 1
        %p1940 = scmp.lt.s32.totalorder %s1937, 7
        %s1941 = scalar_select %p1940, %s1937, 7
        %s1942 = smul.addr %s1939, 8
        %s1943 = sadd.s32 %s1941, %s1942
        %s1944 = smul.addr %s1943, 8
        %s1945 = scalar_lea.vmem %s5, %s1944
      $region68: #{single_conv_forward.1} parent=63 // pred_fallthru
        _
    $region64: #{single_conv_forward.1} parent=5 // pred_fallthru
      _
  $region6: #{single_conv_forward.1} parent=0 // loop_footer
    %s15 = sadd.s32 1, %s11
  $region7: #{single_conv_forward.1} parent=0 // loop_footer_branch
    %10 = sbr.rel target = $region3
  $region8: #{single_conv_forward.1} parent=0 // loop_exit
    _

</llo_original>
